<compile_context>
chip_gen: v6e
topology: v6e:2x2x1
jax: 0.10.0
libtpu: 0.0.40
codegen_flags: <defaults>
</compile_context>

<pallas_src>
import functools

import jax
import jax.numpy as jnp
from jax import lax
from jax.experimental import pallas as pl
from jax.experimental.pallas import tpu as pltpu

BEV_DIM = 8
RANGE_DIM = 8
C_TOTAL = BEV_DIM + RANGE_DIM


def _rb_fusion_kernel(bev_dim, H, W, lpad,
                      x_ref, w1t_ref, w2_ref, b2_ref, convw_ref, convb_ref,
                      o_ref, pad_ref):
    Bt, C, HW = x_ref.shape
    x = x_ref[...]                       # (Bt, C, HW) f32
    bev = x[:, :bev_dim, :]              # (Bt, BEV, HW)
    rng = x[:, bev_dim:, :]              # (Bt, RNG, HW)

    # ---- channel-wise stats (AdaptiveAvg/MaxPool2d((1,1))), per image ----
    bev_ca = jnp.mean(bev, axis=2, keepdims=True)    # (Bt, BEV, 1)
    bev_cm = jnp.max(bev, axis=2, keepdims=True)
    rng_ca = jnp.mean(rng, axis=2, keepdims=True)    # (Bt, RNG, 1)
    rng_cm = jnp.max(rng, axis=2, keepdims=True)

    # ---- channel MLP: Linear(2C->BEV, no bias) -> ReLU -> Dropout -> Linear(BEV->C) -> Sigmoid
    # VPU broadcast+reduce (the matvecs are far too skinny for the MXU).
    # k-order of W1 columns is [bev_avg, rng_avg, bev_max, rng_max].
    w1t = w1t_ref[...]                               # (2C, BEV) = W1^T
    h = (jnp.sum(w1t[None, :bev_dim] * bev_ca, axis=1, keepdims=True)
         + jnp.sum(w1t[None, bev_dim:C] * rng_ca, axis=1, keepdims=True)
         + jnp.sum(w1t[None, C:C + bev_dim] * bev_cm, axis=1, keepdims=True)
         + jnp.sum(w1t[None, C + bev_dim:] * rng_cm, axis=1, keepdims=True))  # (Bt,1,BEV)
    h = jnp.maximum(h, 0.0)
    # TODO(synk): Dropout(0.2) is treated as eval-mode identity (no stochastic drop).
    g = jnp.sum(w2_ref[...][None] * h, axis=2, keepdims=True) + b2_ref[...][None]  # (Bt,C,1)
    chan_gate = 1.0 / (1.0 + jnp.exp(-g))

    # ---- spatial maps -> flat zero-padded scratch (channel order matches conv) ----
    # Only the pad borders are re-zeroed each step; the interior is fully
    # overwritten (and border-only zeroing stays correct under megacore
    # partitioning of the parallel batch axis).
    pad_ref[:, :, lpad - (W + 1):lpad] = jnp.zeros((Bt, 4, W + 1), jnp.float32)
    pad_ref[:, :, lpad + HW:lpad + HW + W + 1] = jnp.zeros((Bt, 4, W + 1), jnp.float32)
    pad_ref[:, 0:1, lpad:lpad + HW] = jnp.mean(bev, axis=1, keepdims=True)
    pad_ref[:, 1:2, lpad:lpad + HW] = jnp.mean(rng, axis=1, keepdims=True)
    pad_ref[:, 2:3, lpad:lpad + HW] = jnp.max(bev, axis=1, keepdims=True)
    pad_ref[:, 3:4, lpad:lpad + HW] = jnp.max(rng, axis=1, keepdims=True)

    # ---- Conv2d(4 -> 1, k=3, stride=1, pad=1) + bias on the flattened axis ----
    # A (dy, dx) tap is a window read at flat offset dy*W + dx; the zero pad
    # absorbs row overflow, iota masks kill column wrap at the W edges.
    col = lax.broadcasted_iota(jnp.int32, (1, 1, HW), 2) % W
    not_left = col >= 1            # valid output columns for dx = -1
    not_right = col <= W - 2       # valid output columns for dx = +1

    acc = jnp.zeros((Bt, 1, HW), jnp.float32)
    for ky in range(3):
        for kx in range(3):
            off = lpad + (ky - 1) * W + (kx - 1)
            win = pad_ref[:, :, off:off + HW]               # (Bt, 4, HW)
            tap = (convw_ref[0 * 9 + ky * 3 + kx] * win[:, 0:1]
                   + convw_ref[1 * 9 + ky * 3 + kx] * win[:, 1:2]
                   + convw_ref[2 * 9 + ky * 3 + kx] * win[:, 2:3]
                   + convw_ref[3 * 9 + ky * 3 + kx] * win[:, 3:4])
            if kx == 0:
                tap = jnp.where(not_left, tap, 0.0)
            elif kx == 2:
                tap = jnp.where(not_right, tap, 0.0)
            acc = acc + tap
    # NOTE: exact sigmoid kept (kernel is HBM-bound, the VALU divide is off the
    # critical path); pl.reciprocal(..., approx=True) would trade a little
    # accuracy for an EUP slot if that budget is ever acceptable.
    space_gate = 1.0 / (1.0 + jnp.exp(-(acc + convb_ref[0])))   # (Bt, 1, HW)

    # ---- out = chan * x; out = space * out; out = out + x  (fused, one store) ----
    o_ref[...] = (x * (chan_gate * space_gate + 1.0)).astype(o_ref.dtype)


def rb_fusion(x, w1, w2, b2, conv_w, conv_b, *, bev_dim, block_b=None):
    B, C, H, W = x.shape
    HW = H * W
    x_flat = x.reshape(B, C, HW)                         # free for contiguous NCHW
    w1t = w1.astype(jnp.float32).T                       # (2C, BEV)
    w2f = w2.astype(jnp.float32)                         # (C, BEV)
    b2_col = b2.reshape(C, 1).astype(jnp.float32)
    convw_flat = conv_w.reshape(-1).astype(jnp.float32)  # OIHW with O=1 -> (36,)
    convb = conv_b.reshape(1).astype(jnp.float32)

    # Images per grid step: big enough to amortize per-step pipeline overhead,
    # small enough that double-buffered in+out blocks stay well inside VMEM.
    if block_b is None:
        per_img = C * HW * x.dtype.itemsize
        block_b = max(1, min(B, (2 << 20) // max(per_img, 1)))
        while B % block_b:
            block_b -= 1
    # TODO(synk): for very large H*W (e.g. 496x432 production BEV maps on v7x)
    # add a spatial grid axis (stats pass + apply pass) so blocks keep
    # double-buffering inside 64 MiB VMEM; here one block holds whole images.

    lpad = ((W + 1 + 127) // 128) * 128                  # lane-aligned interior write
    pad_width = lpad + HW + W + 1

    block_bytes = block_b * C * HW * x.dtype.itemsize
    pad_bytes = block_b * 4 * pad_width * 4
    needed = 4 * block_bytes + 2 * pad_bytes + (2 << 20)
    vmem_limit = int(min(needed, 100 << 20)) if needed > (32 << 20) else None

    kernel = functools.partial(_rb_fusion_kernel, bev_dim, H, W, lpad)
    grid_spec = pltpu.PrefetchScalarGridSpec(
        num_scalar_prefetch=0,
        grid=(B // block_b,),
        in_specs=[
            pl.BlockSpec((block_b, C, HW), lambda b: (b, 0, 0)),      # x (flattened)
            pl.BlockSpec((2 * C, bev_dim), lambda b: (0, 0)),         # W1^T
            pl.BlockSpec((C, bev_dim), lambda b: (0, 0)),             # W2
            pl.BlockSpec((C, 1), lambda b: (0, 0)),                   # b2
            pl.BlockSpec(memory_space=pltpu.MemorySpace.SMEM),        # conv w (flat)
            pl.BlockSpec(memory_space=pltpu.MemorySpace.SMEM),        # conv b
        ],
        out_specs=pl.BlockSpec((block_b, C, HW), lambda b: (b, 0, 0)),
        scratch_shapes=[pltpu.VMEM((block_b, 4, pad_width), jnp.float32)],
    )
    out_flat = pl.pallas_call(
        kernel,
        out_shape=jax.ShapeDtypeStruct((B, C, HW), x.dtype),
        grid_spec=grid_spec,
        compiler_params=pltpu.CompilerParams(
            dimension_semantics=("parallel",),   # batch images are independent
            vmem_limit_bytes=vmem_limit,
        ),
    )(x_flat, w1t, w2f, b2_col, convw_flat, convb)
    return out_flat.reshape(B, C, H, W)


def rb_fusion_reference(x, w1, w2, b2, conv_w, conv_b, *, bev_dim):
    bev = x[:, :bev_dim]
    rng = x[:, bev_dim:]
    bca, bcm = bev.mean(axis=(2, 3)), bev.max(axis=(2, 3))
    rca, rcm = rng.mean(axis=(2, 3)), rng.max(axis=(2, 3))
    bsa, bsm = bev.mean(axis=1, keepdims=True), bev.max(axis=1, keepdims=True)
    rsa, rsm = rng.mean(axis=1, keepdims=True), rng.max(axis=1, keepdims=True)
    cw = jnp.concatenate([bca, rca, bcm, rcm], axis=-1)       # (B, 2C)
    sw = jnp.concatenate([bsa, rsa, bsm, rsm], axis=1)        # (B, 4, H, W)
    h = jnp.maximum(cw @ w1.T, 0.0)
    g = h @ w2.T + b2[None, :]
    chan = jax.nn.sigmoid(g)[:, :, None, None]
    conv = lax.conv_general_dilated(sw, conv_w, (1, 1), "SAME",
                                    dimension_numbers=("NCHW", "OIHW", "NCHW"))
    space = jax.nn.sigmoid(conv + conv_b.reshape(1, 1, 1, 1))
    out = chan * x
    out = space * out
    return out + x


if __name__ == "__main__":
    B, H, W = 2, 16, 16
    C = C_TOTAL
    key = jax.random.PRNGKey(0)
    kx, k1, k2, k3, k4, k5 = jax.random.split(key, 6)
    x = jax.random.normal(kx, (B, C, H, W), jnp.float32)
    w1 = jax.random.normal(k1, (BEV_DIM, 2 * C), jnp.float32) * 0.1
    w2 = jax.random.normal(k2, (C, BEV_DIM), jnp.float32) * 0.1
    b2 = jax.random.normal(k3, (C,), jnp.float32) * 0.1
    conv_w = jax.random.normal(k4, (1, 4, 3, 3), jnp.float32) * 0.1
    conv_b = jax.random.normal(k5, (1,), jnp.float32) * 0.1

    out = rb_fusion(x, w1, w2, b2, conv_w, conv_b, bev_dim=BEV_DIM)
    jax.block_until_ready(out)

    ref = rb_fusion_reference(x, w1, w2, b2, conv_w, conv_b, bev_dim=BEV_DIM)
    err = float(jnp.max(jnp.abs(out - ref)))
    assert err < 2e-3, f"max abs err {err}"
    print("KERNEL_OK")
</pallas_src>

<mosaic_0001>
module attributes {stable_mosaic.version = 11 : i64} {
  func.func @_rb_fusion_kernel(%arg0: i32, %arg1: memref<2x16x256xf32, #tpu.memory_space<vmem>>, %arg2: memref<32x8xf32, #tpu.memory_space<vmem>>, %arg3: memref<16x8xf32, #tpu.memory_space<vmem>>, %arg4: memref<16x1xf32, #tpu.memory_space<vmem>>, %arg5: memref<36xf32, #tpu.memory_space<smem>>, %arg6: memref<1xf32, #tpu.memory_space<smem>>, %arg7: memref<2x16x256xf32, #tpu.memory_space<vmem>>, %arg8: memref<2x4x401xf32, #tpu.memory_space<vmem>>) attributes {dimension_semantics = [#tpu.dimension_semantics<parallel>], iteration_bounds = array<i64: 1>, scalar_prefetch = 0 : i64, scratch_operands = 1 : i64, tpu.core_type = #tpu.core_type<tc>, window_params = [{transform_indices = @transform_0, window_bounds = array<i64: 2, 16, 256>}, {pipeline_mode = #tpu.pipeline_mode<synchronous>, transform_indices = @transform_1, window_bounds = array<i64: 32, 8>}, {pipeline_mode = #tpu.pipeline_mode<synchronous>, transform_indices = @transform_2, window_bounds = array<i64: 16, 8>}, {pipeline_mode = #tpu.pipeline_mode<synchronous>, transform_indices = @transform_3, window_bounds = array<i64: 16, 1>}, {transform_indices = @transform_4, window_bounds = array<i64: 36>}, {transform_indices = @transform_5, window_bounds = array<i64: 1>}, {transform_indices = @transform_6, window_bounds = array<i64: 2, 16, 256>}]} {
    %c0 = arith.constant 0 : index
    %c0_0 = arith.constant 0 : index
    %c0_1 = arith.constant 0 : index
    %0 = vector.load %arg1[%c0, %c0_0, %c0_1] : memref<2x16x256xf32, #tpu.memory_space<vmem>>, vector<2x16x256xf32>
    %1 = vector.extract_strided_slice %0 {offsets = [0, 0, 0], sizes = [2, 8, 256], strides = [1, 1, 1]} : vector<2x16x256xf32> to vector<2x8x256xf32>
    %2 = vector.extract_strided_slice %0 {offsets = [0, 8, 0], sizes = [2, 8, 256], strides = [1, 1, 1]} : vector<2x16x256xf32> to vector<2x8x256xf32>
    %cst = arith.constant dense<0.000000e+00> : vector<2x8xf32>
    %3 = vector.multi_reduction <add>, %1, %cst [2] : vector<2x8x256xf32> to vector<2x8xf32>
    %4 = vector.shape_cast %3 : vector<2x8xf32> to vector<2x8x1xf32>
    %cst_2 = arith.constant 2.560000e+02 : f32
    %5 = vector.broadcast %cst_2 : f32 to vector<2x8x1xf32>
    %6 = arith.divf %4, %5 : vector<2x8x1xf32>
    %cst_3 = arith.constant dense<0xFF800000> : vector<2x8xf32>
    %7 = vector.multi_reduction <maximumf>, %1, %cst_3 [2] : vector<2x8x256xf32> to vector<2x8xf32>
    %8 = vector.shape_cast %7 : vector<2x8xf32> to vector<2x8x1xf32>
    %cst_4 = arith.constant dense<0.000000e+00> : vector<2x8xf32>
    %9 = vector.multi_reduction <add>, %2, %cst_4 [2] : vector<2x8x256xf32> to vector<2x8xf32>
    %10 = vector.shape_cast %9 : vector<2x8xf32> to vector<2x8x1xf32>
    %cst_5 = arith.constant 2.560000e+02 : f32
    %11 = vector.broadcast %cst_5 : f32 to vector<2x8x1xf32>
    %12 = arith.divf %10, %11 : vector<2x8x1xf32>
    %cst_6 = arith.constant dense<0xFF800000> : vector<2x8xf32>
    %13 = vector.multi_reduction <maximumf>, %2, %cst_6 [2] : vector<2x8x256xf32> to vector<2x8xf32>
    %14 = vector.shape_cast %13 : vector<2x8xf32> to vector<2x8x1xf32>
    %c0_7 = arith.constant 0 : index
    %c0_8 = arith.constant 0 : index
    %15 = vector.load %arg2[%c0_7, %c0_8] : memref<32x8xf32, #tpu.memory_space<vmem>>, vector<32x8xf32>
    %16 = vector.extract_strided_slice %15 {offsets = [0, 0], sizes = [8, 8], strides = [1, 1]} : vector<32x8xf32> to vector<8x8xf32>
    %17 = vector.shape_cast %16 : vector<8x8xf32> to vector<1x8x8xf32>
    %18 = vector.broadcast %17 : vector<1x8x8xf32> to vector<2x8x8xf32>
    %19 = vector.broadcast %6 : vector<2x8x1xf32> to vector<2x8x8xf32>
    %20 = arith.mulf %18, %19 : vector<2x8x8xf32>
    %cst_9 = arith.constant dense<0.000000e+00> : vector<2x8xf32>
    %21 = vector.multi_reduction <add>, %20, %cst_9 [1] : vector<2x8x8xf32> to vector<2x8xf32>
    %22 = vector.shape_cast %21 : vector<2x8xf32> to vector<2x1x8xf32>
    %23 = vector.extract_strided_slice %15 {offsets = [8, 0], sizes = [8, 8], strides = [1, 1]} : vector<32x8xf32> to vector<8x8xf32>
    %24 = vector.shape_cast %23 : vector<8x8xf32> to vector<1x8x8xf32>
    %25 = vector.broadcast %24 : vector<1x8x8xf32> to vector<2x8x8xf32>
    %26 = vector.broadcast %12 : vector<2x8x1xf32> to vector<2x8x8xf32>
    %27 = arith.mulf %25, %26 : vector<2x8x8xf32>
    %cst_10 = arith.constant dense<0.000000e+00> : vector<2x8xf32>
    %28 = vector.multi_reduction <add>, %27, %cst_10 [1] : vector<2x8x8xf32> to vector<2x8xf32>
    %29 = vector.shape_cast %28 : vector<2x8xf32> to vector<2x1x8xf32>
    %30 = arith.addf %22, %29 : vector<2x1x8xf32>
    %31 = vector.extract_strided_slice %15 {offsets = [16, 0], sizes = [8, 8], strides = [1, 1]} : vector<32x8xf32> to vector<8x8xf32>
    %32 = vector.shape_cast %31 : vector<8x8xf32> to vector<1x8x8xf32>
    %33 = vector.broadcast %32 : vector<1x8x8xf32> to vector<2x8x8xf32>
    %34 = vector.broadcast %8 : vector<2x8x1xf32> to vector<2x8x8xf32>
    %35 = arith.mulf %33, %34 : vector<2x8x8xf32>
    %cst_11 = arith.constant dense<0.000000e+00> : vector<2x8xf32>
    %36 = vector.multi_reduction <add>, %35, %cst_11 [1] : vector<2x8x8xf32> to vector<2x8xf32>
    %37 = vector.shape_cast %36 : vector<2x8xf32> to vector<2x1x8xf32>
    %38 = arith.addf %30, %37 : vector<2x1x8xf32>
    %39 = vector.extract_strided_slice %15 {offsets = [24, 0], sizes = [8, 8], strides = [1, 1]} : vector<32x8xf32> to vector<8x8xf32>
    %40 = vector.shape_cast %39 : vector<8x8xf32> to vector<1x8x8xf32>
    %41 = vector.broadcast %40 : vector<1x8x8xf32> to vector<2x8x8xf32>
    %42 = vector.broadcast %14 : vector<2x8x1xf32> to vector<2x8x8xf32>
    %43 = arith.mulf %41, %42 : vector<2x8x8xf32>
    %cst_12 = arith.constant dense<0.000000e+00> : vector<2x8xf32>
    %44 = vector.multi_reduction <add>, %43, %cst_12 [1] : vector<2x8x8xf32> to vector<2x8xf32>
    %45 = vector.shape_cast %44 : vector<2x8xf32> to vector<2x1x8xf32>
    %46 = arith.addf %38, %45 : vector<2x1x8xf32>
    %cst_13 = arith.constant 0.000000e+00 : f32
    %47 = vector.broadcast %cst_13 : f32 to vector<2x1x8xf32>
    %48 = arith.maximumf %46, %47 : vector<2x1x8xf32>
    %c0_14 = arith.constant 0 : index
    %c0_15 = arith.constant 0 : index
    %49 = vector.load %arg3[%c0_14, %c0_15] : memref<16x8xf32, #tpu.memory_space<vmem>>, vector<16x8xf32>
    %50 = vector.shape_cast %49 : vector<16x8xf32> to vector<1x16x8xf32>
    %51 = vector.broadcast %50 : vector<1x16x8xf32> to vector<2x16x8xf32>
    %52 = vector.broadcast %48 : vector<2x1x8xf32> to vector<2x16x8xf32>
    %53 = arith.mulf %51, %52 : vector<2x16x8xf32>
    %cst_16 = arith.constant dense<0.000000e+00> : vector<2x16xf32>
    %54 = vector.multi_reduction <add>, %53, %cst_16 [2] : vector<2x16x8xf32> to vector<2x16xf32>
    %55 = vector.shape_cast %54 : vector<2x16xf32> to vector<2x16x1xf32>
    %c0_17 = arith.constant 0 : index
    %c0_18 = arith.constant 0 : index
    %56 = vector.load %arg4[%c0_17, %c0_18] : memref<16x1xf32, #tpu.memory_space<vmem>>, vector<16x1xf32>
    %57 = vector.shape_cast %56 : vector<16x1xf32> to vector<1x16x1xf32>
    %58 = vector.broadcast %57 : vector<1x16x1xf32> to vector<2x16x1xf32>
    %59 = arith.addf %55, %58 : vector<2x16x1xf32>
    %cst_19 = arith.constant 0.000000e+00 : f32
    %60 = vector.broadcast %cst_19 : f32 to vector<2x16x1xf32>
    %61 = arith.subf %60, %59 : vector<2x16x1xf32>
    %62 = math.exp %61 : vector<2x16x1xf32>
    %cst_20 = arith.constant 1.000000e+00 : f32
    %63 = vector.broadcast %cst_20 : f32 to vector<2x16x1xf32>
    %64 = arith.addf %63, %62 : vector<2x16x1xf32>
    %cst_21 = arith.constant 1.000000e+00 : f32
    %65 = vector.broadcast %cst_21 : f32 to vector<2x16x1xf32>
    %66 = arith.divf %65, %64 : vector<2x16x1xf32>
    %cst_22 = arith.constant 0.000000e+00 : f32
    %67 = vector.broadcast %cst_22 : f32 to vector<2x4x17xf32>
    %c0_23 = arith.constant 0 : index
    %c0_24 = arith.constant 0 : index
    %c111 = arith.constant 111 : index
    %68 = vector.load %arg8[%c0_23, %c0_24, %c111] : memref<2x4x401xf32, #tpu.memory_space<vmem>>, vector<2x4x17xf32>
    tpu.vector_store %arg8[%c0_23, %c0_24, %c111], %67 {strides = array<i32>} : memref<2x4x401xf32, #tpu.memory_space<vmem>>, vector<2x4x17xf32>,
    %cst_25 = arith.constant 0.000000e+00 : f32
    %69 = vector.broadcast %cst_25 : f32 to vector<2x4x17xf32>
    %c0_26 = arith.constant 0 : index
    %c0_27 = arith.constant 0 : index
    %c384 = arith.constant 384 : index
    %70 = vector.load %arg8[%c0_26, %c0_27, %c384] : memref<2x4x401xf32, #tpu.memory_space<vmem>>, vector<2x4x17xf32>
    tpu.vector_store %arg8[%c0_26, %c0_27, %c384], %69 {strides = array<i32>} : memref<2x4x401xf32, #tpu.memory_space<vmem>>, vector<2x4x17xf32>,
    %cst_28 = arith.constant dense<0.000000e+00> : vector<2x256xf32>
    %71 = vector.multi_reduction <add>, %1, %cst_28 [1] : vector<2x8x256xf32> to vector<2x256xf32>
    %72 = vector.shape_cast %71 : vector<2x256xf32> to vector<2x1x256xf32>
    %cst_29 = arith.constant 8.000000e+00 : f32
    %73 = vector.broadcast %cst_29 : f32 to vector<2x1x256xf32>
    %74 = arith.divf %72, %73 : vector<2x1x256xf32>
    %c0_30 = arith.constant 0 : index
    %c0_31 = arith.constant 0 : index
    %c128 = arith.constant 128 : index
    %75 = vector.load %arg8[%c0_30, %c0_31, %c128] : memref<2x4x401xf32, #tpu.memory_space<vmem>>, vector<2x1x256xf32>
    tpu.vector_store %arg8[%c0_30, %c0_31, %c128], %74 {strides = array<i32>} : memref<2x4x401xf32, #tpu.memory_space<vmem>>, vector<2x1x256xf32>,
    %cst_32 = arith.constant dense<0.000000e+00> : vector<2x256xf32>
    %76 = vector.multi_reduction <add>, %2, %cst_32 [1] : vector<2x8x256xf32> to vector<2x256xf32>
    %77 = vector.shape_cast %76 : vector<2x256xf32> to vector<2x1x256xf32>
    %cst_33 = arith.constant 8.000000e+00 : f32
    %78 = vector.broadcast %cst_33 : f32 to vector<2x1x256xf32>
    %79 = arith.divf %77, %78 : vector<2x1x256xf32>
    %c0_34 = arith.constant 0 : index
    %c1 = arith.constant 1 : index
    %c128_35 = arith.constant 128 : index
    %80 = vector.load %arg8[%c0_34, %c1, %c128_35] : memref<2x4x401xf32, #tpu.memory_space<vmem>>, vector<2x1x256xf32>
    tpu.vector_store %arg8[%c0_34, %c1, %c128_35], %79 {strides = array<i32>} : memref<2x4x401xf32, #tpu.memory_space<vmem>>, vector<2x1x256xf32>,
    %cst_36 = arith.constant dense<0xFF800000> : vector<2x256xf32>
    %81 = vector.multi_reduction <maximumf>, %1, %cst_36 [1] : vector<2x8x256xf32> to vector<2x256xf32>
    %82 = vector.shape_cast %81 : vector<2x256xf32> to vector<2x1x256xf32>
    %c0_37 = arith.constant 0 : index
    %c2 = arith.constant 2 : index
    %c128_38 = arith.constant 128 : index
    %83 = vector.load %arg8[%c0_37, %c2, %c128_38] : memref<2x4x401xf32, #tpu.memory_space<vmem>>, vector<2x1x256xf32>
    tpu.vector_store %arg8[%c0_37, %c2, %c128_38], %82 {strides = array<i32>} : memref<2x4x401xf32, #tpu.memory_space<vmem>>, vector<2x1x256xf32>,
    %cst_39 = arith.constant dense<0xFF800000> : vector<2x256xf32>
    %84 = vector.multi_reduction <maximumf>, %2, %cst_39 [1] : vector<2x8x256xf32> to vector<2x256xf32>
    %85 = vector.shape_cast %84 : vector<2x256xf32> to vector<2x1x256xf32>
    %c0_40 = arith.constant 0 : index
    %c3 = arith.constant 3 : index
    %c128_41 = arith.constant 128 : index
    %86 = vector.load %arg8[%c0_40, %c3, %c128_41] : memref<2x4x401xf32, #tpu.memory_space<vmem>>, vector<2x1x256xf32>
    tpu.vector_store %arg8[%c0_40, %c3, %c128_41], %85 {strides = array<i32>} : memref<2x4x401xf32, #tpu.memory_space<vmem>>, vector<2x1x256xf32>,
    %87 = tpu.iota {dimensions = array<i32: 2>} : vector<1x1x256xi32>
    %c16_i32 = arith.constant 16 : i32
    %c0_i32 = arith.constant 0 : i32
    %88 = arith.cmpi eq, %c16_i32, %c0_i32 : i32
    %c1_i32 = arith.constant 1 : i32
    %89 = arith.select %88, %c1_i32, %c16_i32 : i32
    %90 = vector.broadcast %89 : i32 to vector<1x1x256xi32>
    %91 = arith.remsi %87, %90 : vector<1x1x256xi32>
    %c0_i32_42 = arith.constant 0 : i32
    %92 = vector.broadcast %c0_i32_42 : i32 to vector<1x1x256xi32>
    %93 = arith.cmpi ne, %91, %92 : vector<1x1x256xi32>
    %c0_i32_43 = arith.constant 0 : i32
    %94 = vector.broadcast %c0_i32_43 : i32 to vector<1x1x256xi32>
    %95 = arith.cmpi slt, %91, %94 : vector<1x1x256xi32>
    %c0_i32_44 = arith.constant 0 : i32
    %96 = arith.cmpi slt, %89, %c0_i32_44 : i32
    %97 = vector.broadcast %96 : i1 to vector<1x1x256xi1>
    %98 = vector.broadcast %97 : vector<1x1x256xi1> to vector<1x1x256xi1>
    %99 = arith.xori %95, %98 : vector<1x1x256xi1>
    %100 = arith.andi %99, %93 : vector<1x1x256xi1>
    %101 = vector.broadcast %89 : i32 to vector<1x1x256xi32>
    %102 = arith.addi %91, %101 : vector<1x1x256xi32>
    %103 = arith.select %100, %102, %91 : vector<1x1x256xi1>, vector<1x1x256xi32>
    %c1_i32_45 = arith.constant 1 : i32
    %104 = vector.broadcast %c1_i32_45 : i32 to vector<1x1x256xi32>
    %105 = arith.cmpi sge, %103, %104 : vector<1x1x256xi32>
    %c14_i32 = arith.constant 14 : i32
    %106 = vector.broadcast %c14_i32 : i32 to vector<1x1x256xi32>
    %107 = arith.cmpi sle, %103, %106 : vector<1x1x256xi32>
    %cst_46 = arith.constant 0.000000e+00 : f32
    %108 = vector.broadcast %cst_46 : f32 to vector<2x1x256xf32>
    %c0_47 = arith.constant 0 : index
    %c0_48 = arith.constant 0 : index
    %c111_49 = arith.constant 111 : index
    %109 = vector.load %arg8[%c0_47, %c0_48, %c111_49] : memref<2x4x401xf32, #tpu.memory_space<vmem>>, vector<2x4x256xf32>
    %c0_50 = arith.constant 0 : index
    %110 = memref.load %arg5[%c0_50] : memref<36xf32, #tpu.memory_space<smem>>
    %111 = vector.extract_strided_slice %109 {offsets = [0, 0, 0], sizes = [2, 1, 256], strides = [1, 1, 1]} : vector<2x4x256xf32> to vector<2x1x256xf32>
    %112 = vector.broadcast %110 : f32 to vector<2x1x256xf32>
    %113 = arith.mulf %112, %111 : vector<2x1x256xf32>
    %c9 = arith.constant 9 : index
    %114 = memref.load %arg5[%c9] : memref<36xf32, #tpu.memory_space<smem>>
    %115 = vector.extract_strided_slice %109 {offsets = [0, 1, 0], sizes = [2, 1, 256], strides = [1, 1, 1]} : vector<2x4x256xf32> to vector<2x1x256xf32>
    %116 = vector.broadcast %114 : f32 to vector<2x1x256xf32>
    %117 = arith.mulf %116, %115 : vector<2x1x256xf32>
    %118 = arith.addf %113, %117 : vector<2x1x256xf32>
    %c18 = arith.constant 18 : index
    %119 = memref.load %arg5[%c18] : memref<36xf32, #tpu.memory_space<smem>>
    %120 = vector.extract_strided_slice %109 {offsets = [0, 2, 0], sizes = [2, 1, 256], strides = [1, 1, 1]} : vector<2x4x256xf32> to vector<2x1x256xf32>
    %121 = vector.broadcast %119 : f32 to vector<2x1x256xf32>
    %122 = arith.mulf %121, %120 : vector<2x1x256xf32>
    %123 = arith.addf %118, %122 : vector<2x1x256xf32>
    %c27 = arith.constant 27 : index
    %124 = memref.load %arg5[%c27] : memref<36xf32, #tpu.memory_space<smem>>
    %125 = vector.extract_strided_slice %109 {offsets = [0, 3, 0], sizes = [2, 1, 256], strides = [1, 1, 1]} : vector<2x4x256xf32> to vector<2x1x256xf32>
    %126 = vector.broadcast %124 : f32 to vector<2x1x256xf32>
    %127 = arith.mulf %126, %125 : vector<2x1x256xf32>
    %128 = arith.addf %123, %127 : vector<2x1x256xf32>
    %cst_51 = arith.constant 0.000000e+00 : f32
    %129 = vector.shape_cast %105 : vector<1x1x256xi1> to vector<1x1x256xi1>
    %130 = vector.broadcast %129 : vector<1x1x256xi1> to vector<2x1x256xi1>
    %131 = vector.broadcast %cst_51 : f32 to vector<2x1x256xf32>
    %132 = arith.select %130, %128, %131 : vector<2x1x256xi1>, vector<2x1x256xf32>
    %133 = arith.addf %108, %132 : vector<2x1x256xf32>
    %c0_52 = arith.constant 0 : index
    %c0_53 = arith.constant 0 : index
    %c112 = arith.constant 112 : index
    %134 = vector.load %arg8[%c0_52, %c0_53, %c112] : memref<2x4x401xf32, #tpu.memory_space<vmem>>, vector<2x4x256xf32>
    %c1_54 = arith.constant 1 : index
    %135 = memref.load %arg5[%c1_54] : memref<36xf32, #tpu.memory_space<smem>>
    %136 = vector.extract_strided_slice %134 {offsets = [0, 0, 0], sizes = [2, 1, 256], strides = [1, 1, 1]} : vector<2x4x256xf32> to vector<2x1x256xf32>
    %137 = vector.broadcast %135 : f32 to vector<2x1x256xf32>
    %138 = arith.mulf %137, %136 : vector<2x1x256xf32>
    %c10 = arith.constant 10 : index
    %139 = memref.load %arg5[%c10] : memref<36xf32, #tpu.memory_space<smem>>
    %140 = vector.extract_strided_slice %134 {offsets = [0, 1, 0], sizes = [2, 1, 256], strides = [1, 1, 1]} : vector<2x4x256xf32> to vector<2x1x256xf32>
    %141 = vector.broadcast %139 : f32 to vector<2x1x256xf32>
    %142 = arith.mulf %141, %140 : vector<2x1x256xf32>
    %143 = arith.addf %138, %142 : vector<2x1x256xf32>
    %c19 = arith.constant 19 : index
    %144 = memref.load %arg5[%c19] : memref<36xf32, #tpu.memory_space<smem>>
    %145 = vector.extract_strided_slice %134 {offsets = [0, 2, 0], sizes = [2, 1, 256], strides = [1, 1, 1]} : vector<2x4x256xf32> to vector<2x1x256xf32>
    %146 = vector.broadcast %144 : f32 to vector<2x1x256xf32>
    %147 = arith.mulf %146, %145 : vector<2x1x256xf32>
    %148 = arith.addf %143, %147 : vector<2x1x256xf32>
    %c28 = arith.constant 28 : index
    %149 = memref.load %arg5[%c28] : memref<36xf32, #tpu.memory_space<smem>>
    %150 = vector.extract_strided_slice %134 {offsets = [0, 3, 0], sizes = [2, 1, 256], strides = [1, 1, 1]} : vector<2x4x256xf32> to vector<2x1x256xf32>
    %151 = vector.broadcast %149 : f32 to vector<2x1x256xf32>
    %152 = arith.mulf %151, %150 : vector<2x1x256xf32>
    %153 = arith.addf %148, %152 : vector<2x1x256xf32>
    %154 = arith.addf %133, %153 : vector<2x1x256xf32>
    %c0_55 = arith.constant 0 : index
    %c0_56 = arith.constant 0 : index
    %c113 = arith.constant 113 : index
    %155 = vector.load %arg8[%c0_55, %c0_56, %c113] : memref<2x4x401xf32, #tpu.memory_space<vmem>>, vector<2x4x256xf32>
    %c2_57 = arith.constant 2 : index
    %156 = memref.load %arg5[%c2_57] : memref<36xf32, #tpu.memory_space<smem>>
    %157 = vector.extract_strided_slice %155 {offsets = [0, 0, 0], sizes = [2, 1, 256], strides = [1, 1, 1]} : vector<2x4x256xf32> to vector<2x1x256xf32>
    %158 = vector.broadcast %156 : f32 to vector<2x1x256xf32>
    %159 = arith.mulf %158, %157 : vector<2x1x256xf32>
    %c11 = arith.constant 11 : index
    %160 = memref.load %arg5[%c11] : memref<36xf32, #tpu.memory_space<smem>>
    %161 = vector.extract_strided_slice %155 {offsets = [0, 1, 0], sizes = [2, 1, 256], strides = [1, 1, 1]} : vector<2x4x256xf32> to vector<2x1x256xf32>
    %162 = vector.broadcast %160 : f32 to vector<2x1x256xf32>
    %163 = arith.mulf %162, %161 : vector<2x1x256xf32>
    %164 = arith.addf %159, %163 : vector<2x1x256xf32>
    %c20 = arith.constant 20 : index
    %165 = memref.load %arg5[%c20] : memref<36xf32, #tpu.memory_space<smem>>
    %166 = vector.extract_strided_slice %155 {offsets = [0, 2, 0], sizes = [2, 1, 256], strides = [1, 1, 1]} : vector<2x4x256xf32> to vector<2x1x256xf32>
    %167 = vector.broadcast %165 : f32 to vector<2x1x256xf32>
    %168 = arith.mulf %167, %166 : vector<2x1x256xf32>
    %169 = arith.addf %164, %168 : vector<2x1x256xf32>
    %c29 = arith.constant 29 : index
    %170 = memref.load %arg5[%c29] : memref<36xf32, #tpu.memory_space<smem>>
    %171 = vector.extract_strided_slice %155 {offsets = [0, 3, 0], sizes = [2, 1, 256], strides = [1, 1, 1]} : vector<2x4x256xf32> to vector<2x1x256xf32>
    %172 = vector.broadcast %170 : f32 to vector<2x1x256xf32>
    %173 = arith.mulf %172, %171 : vector<2x1x256xf32>
    %174 = arith.addf %169, %173 : vector<2x1x256xf32>
    %cst_58 = arith.constant 0.000000e+00 : f32
    %175 = vector.shape_cast %107 : vector<1x1x256xi1> to vector<1x1x256xi1>
    %176 = vector.broadcast %175 : vector<1x1x256xi1> to vector<2x1x256xi1>
    %177 = vector.broadcast %cst_58 : f32 to vector<2x1x256xf32>
    %178 = arith.select %176, %174, %177 : vector<2x1x256xi1>, vector<2x1x256xf32>
    %179 = arith.addf %154, %178 : vector<2x1x256xf32>
    %c0_59 = arith.constant 0 : index
    %c0_60 = arith.constant 0 : index
    %c127 = arith.constant 127 : index
    %180 = vector.load %arg8[%c0_59, %c0_60, %c127] : memref<2x4x401xf32, #tpu.memory_space<vmem>>, vector<2x4x256xf32>
    %c3_61 = arith.constant 3 : index
    %181 = memref.load %arg5[%c3_61] : memref<36xf32, #tpu.memory_space<smem>>
    %182 = vector.extract_strided_slice %180 {offsets = [0, 0, 0], sizes = [2, 1, 256], strides = [1, 1, 1]} : vector<2x4x256xf32> to vector<2x1x256xf32>
    %183 = vector.broadcast %181 : f32 to vector<2x1x256xf32>
    %184 = arith.mulf %183, %182 : vector<2x1x256xf32>
    %c12 = arith.constant 12 : index
    %185 = memref.load %arg5[%c12] : memref<36xf32, #tpu.memory_space<smem>>
    %186 = vector.extract_strided_slice %180 {offsets = [0, 1, 0], sizes = [2, 1, 256], strides = [1, 1, 1]} : vector<2x4x256xf32> to vector<2x1x256xf32>
    %187 = vector.broadcast %185 : f32 to vector<2x1x256xf32>
    %188 = arith.mulf %187, %186 : vector<2x1x256xf32>
    %189 = arith.addf %184, %188 : vector<2x1x256xf32>
    %c21 = arith.constant 21 : index
    %190 = memref.load %arg5[%c21] : memref<36xf32, #tpu.memory_space<smem>>
    %191 = vector.extract_strided_slice %180 {offsets = [0, 2, 0], sizes = [2, 1, 256], strides = [1, 1, 1]} : vector<2x4x256xf32> to vector<2x1x256xf32>
    %192 = vector.broadcast %190 : f32 to vector<2x1x256xf32>
    %193 = arith.mulf %192, %191 : vector<2x1x256xf32>
    %194 = arith.addf %189, %193 : vector<2x1x256xf32>
    %c30 = arith.constant 30 : index
    %195 = memref.load %arg5[%c30] : memref<36xf32, #tpu.memory_space<smem>>
    %196 = vector.extract_strided_slice %180 {offsets = [0, 3, 0], sizes = [2, 1, 256], strides = [1, 1, 1]} : vector<2x4x256xf32> to vector<2x1x256xf32>
    %197 = vector.broadcast %195 : f32 to vector<2x1x256xf32>
    %198 = arith.mulf %197, %196 : vector<2x1x256xf32>
    %199 = arith.addf %194, %198 : vector<2x1x256xf32>
    %cst_62 = arith.constant 0.000000e+00 : f32
    %200 = vector.shape_cast %105 : vector<1x1x256xi1> to vector<1x1x256xi1>
    %201 = vector.broadcast %200 : vector<1x1x256xi1> to vector<2x1x256xi1>
    %202 = vector.broadcast %cst_62 : f32 to vector<2x1x256xf32>
    %203 = arith.select %201, %199, %202 : vector<2x1x256xi1>, vector<2x1x256xf32>
    %204 = arith.addf %179, %203 : vector<2x1x256xf32>
    %c0_63 = arith.constant 0 : index
    %c0_64 = arith.constant 0 : index
    %c128_65 = arith.constant 128 : index
    %205 = vector.load %arg8[%c0_63, %c0_64, %c128_65] : memref<2x4x401xf32, #tpu.memory_space<vmem>>, vector<2x4x256xf32>
    %c4 = arith.constant 4 : index
    %206 = memref.load %arg5[%c4] : memref<36xf32, #tpu.memory_space<smem>>
    %207 = vector.extract_strided_slice %205 {offsets = [0, 0, 0], sizes = [2, 1, 256], strides = [1, 1, 1]} : vector<2x4x256xf32> to vector<2x1x256xf32>
    %208 = vector.broadcast %206 : f32 to vector<2x1x256xf32>
    %209 = arith.mulf %208, %207 : vector<2x1x256xf32>
    %c13 = arith.constant 13 : index
    %210 = memref.load %arg5[%c13] : memref<36xf32, #tpu.memory_space<smem>>
    %211 = vector.extract_strided_slice %205 {offsets = [0, 1, 0], sizes = [2, 1, 256], strides = [1, 1, 1]} : vector<2x4x256xf32> to vector<2x1x256xf32>
    %212 = vector.broadcast %210 : f32 to vector<2x1x256xf32>
    %213 = arith.mulf %212, %211 : vector<2x1x256xf32>
    %214 = arith.addf %209, %213 : vector<2x1x256xf32>
    %c22 = arith.constant 22 : index
    %215 = memref.load %arg5[%c22] : memref<36xf32, #tpu.memory_space<smem>>
    %216 = vector.extract_strided_slice %205 {offsets = [0, 2, 0], sizes = [2, 1, 256], strides = [1, 1, 1]} : vector<2x4x256xf32> to vector<2x1x256xf32>
    %217 = vector.broadcast %215 : f32 to vector<2x1x256xf32>
    %218 = arith.mulf %217, %216 : vector<2x1x256xf32>
    %219 = arith.addf %214, %218 : vector<2x1x256xf32>
    %c31 = arith.constant 31 : index
    %220 = memref.load %arg5[%c31] : memref<36xf32, #tpu.memory_space<smem>>
    %221 = vector.extract_strided_slice %205 {offsets = [0, 3, 0], sizes = [2, 1, 256], strides = [1, 1, 1]} : vector<2x4x256xf32> to vector<2x1x256xf32>
    %222 = vector.broadcast %220 : f32 to vector<2x1x256xf32>
    %223 = arith.mulf %222, %221 : vector<2x1x256xf32>
    %224 = arith.addf %219, %223 : vector<2x1x256xf32>
    %225 = arith.addf %204, %224 : vector<2x1x256xf32>
    %c0_66 = arith.constant 0 : index
    %c0_67 = arith.constant 0 : index
    %c129 = arith.constant 129 : index
    %226 = vector.load %arg8[%c0_66, %c0_67, %c129] : memref<2x4x401xf32, #tpu.memory_space<vmem>>, vector<2x4x256xf32>
    %c5 = arith.constant 5 : index
    %227 = memref.load %arg5[%c5] : memref<36xf32, #tpu.memory_space<smem>>
    %228 = vector.extract_strided_slice %226 {offsets = [0, 0, 0], sizes = [2, 1, 256], strides = [1, 1, 1]} : vector<2x4x256xf32> to vector<2x1x256xf32>
    %229 = vector.broadcast %227 : f32 to vector<2x1x256xf32>
    %230 = arith.mulf %229, %228 : vector<2x1x256xf32>
    %c14 = arith.constant 14 : index
    %231 = memref.load %arg5[%c14] : memref<36xf32, #tpu.memory_space<smem>>
    %232 = vector.extract_strided_slice %226 {offsets = [0, 1, 0], sizes = [2, 1, 256], strides = [1, 1, 1]} : vector<2x4x256xf32> to vector<2x1x256xf32>
    %233 = vector.broadcast %231 : f32 to vector<2x1x256xf32>
    %234 = arith.mulf %233, %232 : vector<2x1x256xf32>
    %235 = arith.addf %230, %234 : vector<2x1x256xf32>
    %c23 = arith.constant 23 : index
    %236 = memref.load %arg5[%c23] : memref<36xf32, #tpu.memory_space<smem>>
    %237 = vector.extract_strided_slice %226 {offsets = [0, 2, 0], sizes = [2, 1, 256], strides = [1, 1, 1]} : vector<2x4x256xf32> to vector<2x1x256xf32>
    %238 = vector.broadcast %236 : f32 to vector<2x1x256xf32>
    %239 = arith.mulf %238, %237 : vector<2x1x256xf32>
    %240 = arith.addf %235, %239 : vector<2x1x256xf32>
    %c32 = arith.constant 32 : index
    %241 = memref.load %arg5[%c32] : memref<36xf32, #tpu.memory_space<smem>>
    %242 = vector.extract_strided_slice %226 {offsets = [0, 3, 0], sizes = [2, 1, 256], strides = [1, 1, 1]} : vector<2x4x256xf32> to vector<2x1x256xf32>
    %243 = vector.broadcast %241 : f32 to vector<2x1x256xf32>
    %244 = arith.mulf %243, %242 : vector<2x1x256xf32>
    %245 = arith.addf %240, %244 : vector<2x1x256xf32>
    %cst_68 = arith.constant 0.000000e+00 : f32
    %246 = vector.shape_cast %107 : vector<1x1x256xi1> to vector<1x1x256xi1>
    %247 = vector.broadcast %246 : vector<1x1x256xi1> to vector<2x1x256xi1>
    %248 = vector.broadcast %cst_68 : f32 to vector<2x1x256xf32>
    %249 = arith.select %247, %245, %248 : vector<2x1x256xi1>, vector<2x1x256xf32>
    %250 = arith.addf %225, %249 : vector<2x1x256xf32>
    %c0_69 = arith.constant 0 : index
    %c0_70 = arith.constant 0 : index
    %c143 = arith.constant 143 : index
    %251 = vector.load %arg8[%c0_69, %c0_70, %c143] : memref<2x4x401xf32, #tpu.memory_space<vmem>>, vector<2x4x256xf32>
    %c6 = arith.constant 6 : index
    %252 = memref.load %arg5[%c6] : memref<36xf32, #tpu.memory_space<smem>>
    %253 = vector.extract_strided_slice %251 {offsets = [0, 0, 0], sizes = [2, 1, 256], strides = [1, 1, 1]} : vector<2x4x256xf32> to vector<2x1x256xf32>
    %254 = vector.broadcast %252 : f32 to vector<2x1x256xf32>
    %255 = arith.mulf %254, %253 : vector<2x1x256xf32>
    %c15 = arith.constant 15 : index
    %256 = memref.load %arg5[%c15] : memref<36xf32, #tpu.memory_space<smem>>
    %257 = vector.extract_strided_slice %251 {offsets = [0, 1, 0], sizes = [2, 1, 256], strides = [1, 1, 1]} : vector<2x4x256xf32> to vector<2x1x256xf32>
    %258 = vector.broadcast %256 : f32 to vector<2x1x256xf32>
    %259 = arith.mulf %258, %257 : vector<2x1x256xf32>
    %260 = arith.addf %255, %259 : vector<2x1x256xf32>
    %c24 = arith.constant 24 : index
    %261 = memref.load %arg5[%c24] : memref<36xf32, #tpu.memory_space<smem>>
    %262 = vector.extract_strided_slice %251 {offsets = [0, 2, 0], sizes = [2, 1, 256], strides = [1, 1, 1]} : vector<2x4x256xf32> to vector<2x1x256xf32>
    %263 = vector.broadcast %261 : f32 to vector<2x1x256xf32>
    %264 = arith.mulf %263, %262 : vector<2x1x256xf32>
    %265 = arith.addf %260, %264 : vector<2x1x256xf32>
    %c33 = arith.constant 33 : index
    %266 = memref.load %arg5[%c33] : memref<36xf32, #tpu.memory_space<smem>>
    %267 = vector.extract_strided_slice %251 {offsets = [0, 3, 0], sizes = [2, 1, 256], strides = [1, 1, 1]} : vector<2x4x256xf32> to vector<2x1x256xf32>
    %268 = vector.broadcast %266 : f32 to vector<2x1x256xf32>
    %269 = arith.mulf %268, %267 : vector<2x1x256xf32>
    %270 = arith.addf %265, %269 : vector<2x1x256xf32>
    %cst_71 = arith.constant 0.000000e+00 : f32
    %271 = vector.shape_cast %105 : vector<1x1x256xi1> to vector<1x1x256xi1>
    %272 = vector.broadcast %271 : vector<1x1x256xi1> to vector<2x1x256xi1>
    %273 = vector.broadcast %cst_71 : f32 to vector<2x1x256xf32>
    %274 = arith.select %272, %270, %273 : vector<2x1x256xi1>, vector<2x1x256xf32>
    %275 = arith.addf %250, %274 : vector<2x1x256xf32>
    %c0_72 = arith.constant 0 : index
    %c0_73 = arith.constant 0 : index
    %c144 = arith.constant 144 : index
    %276 = vector.load %arg8[%c0_72, %c0_73, %c144] : memref<2x4x401xf32, #tpu.memory_space<vmem>>, vector<2x4x256xf32>
    %c7 = arith.constant 7 : index
    %277 = memref.load %arg5[%c7] : memref<36xf32, #tpu.memory_space<smem>>
    %278 = vector.extract_strided_slice %276 {offsets = [0, 0, 0], sizes = [2, 1, 256], strides = [1, 1, 1]} : vector<2x4x256xf32> to vector<2x1x256xf32>
    %279 = vector.broadcast %277 : f32 to vector<2x1x256xf32>
    %280 = arith.mulf %279, %278 : vector<2x1x256xf32>
    %c16 = arith.constant 16 : index
    %281 = memref.load %arg5[%c16] : memref<36xf32, #tpu.memory_space<smem>>
    %282 = vector.extract_strided_slice %276 {offsets = [0, 1, 0], sizes = [2, 1, 256], strides = [1, 1, 1]} : vector<2x4x256xf32> to vector<2x1x256xf32>
    %283 = vector.broadcast %281 : f32 to vector<2x1x256xf32>
    %284 = arith.mulf %283, %282 : vector<2x1x256xf32>
    %285 = arith.addf %280, %284 : vector<2x1x256xf32>
    %c25 = arith.constant 25 : index
    %286 = memref.load %arg5[%c25] : memref<36xf32, #tpu.memory_space<smem>>
    %287 = vector.extract_strided_slice %276 {offsets = [0, 2, 0], sizes = [2, 1, 256], strides = [1, 1, 1]} : vector<2x4x256xf32> to vector<2x1x256xf32>
    %288 = vector.broadcast %286 : f32 to vector<2x1x256xf32>
    %289 = arith.mulf %288, %287 : vector<2x1x256xf32>
    %290 = arith.addf %285, %289 : vector<2x1x256xf32>
    %c34 = arith.constant 34 : index
    %291 = memref.load %arg5[%c34] : memref<36xf32, #tpu.memory_space<smem>>
    %292 = vector.extract_strided_slice %276 {offsets = [0, 3, 0], sizes = [2, 1, 256], strides = [1, 1, 1]} : vector<2x4x256xf32> to vector<2x1x256xf32>
    %293 = vector.broadcast %291 : f32 to vector<2x1x256xf32>
    %294 = arith.mulf %293, %292 : vector<2x1x256xf32>
    %295 = arith.addf %290, %294 : vector<2x1x256xf32>
    %296 = arith.addf %275, %295 : vector<2x1x256xf32>
    %c0_74 = arith.constant 0 : index
    %c0_75 = arith.constant 0 : index
    %c145 = arith.constant 145 : index
    %297 = vector.load %arg8[%c0_74, %c0_75, %c145] : memref<2x4x401xf32, #tpu.memory_space<vmem>>, vector<2x4x256xf32>
    %c8 = arith.constant 8 : index
    %298 = memref.load %arg5[%c8] : memref<36xf32, #tpu.memory_space<smem>>
    %299 = vector.extract_strided_slice %297 {offsets = [0, 0, 0], sizes = [2, 1, 256], strides = [1, 1, 1]} : vector<2x4x256xf32> to vector<2x1x256xf32>
    %300 = vector.broadcast %298 : f32 to vector<2x1x256xf32>
    %301 = arith.mulf %300, %299 : vector<2x1x256xf32>
    %c17 = arith.constant 17 : index
    %302 = memref.load %arg5[%c17] : memref<36xf32, #tpu.memory_space<smem>>
    %303 = vector.extract_strided_slice %297 {offsets = [0, 1, 0], sizes = [2, 1, 256], strides = [1, 1, 1]} : vector<2x4x256xf32> to vector<2x1x256xf32>
    %304 = vector.broadcast %302 : f32 to vector<2x1x256xf32>
    %305 = arith.mulf %304, %303 : vector<2x1x256xf32>
    %306 = arith.addf %301, %305 : vector<2x1x256xf32>
    %c26 = arith.constant 26 : index
    %307 = memref.load %arg5[%c26] : memref<36xf32, #tpu.memory_space<smem>>
    %308 = vector.extract_strided_slice %297 {offsets = [0, 2, 0], sizes = [2, 1, 256], strides = [1, 1, 1]} : vector<2x4x256xf32> to vector<2x1x256xf32>
    %309 = vector.broadcast %307 : f32 to vector<2x1x256xf32>
    %310 = arith.mulf %309, %308 : vector<2x1x256xf32>
    %311 = arith.addf %306, %310 : vector<2x1x256xf32>
    %c35 = arith.constant 35 : index
    %312 = memref.load %arg5[%c35] : memref<36xf32, #tpu.memory_space<smem>>
    %313 = vector.extract_strided_slice %297 {offsets = [0, 3, 0], sizes = [2, 1, 256], strides = [1, 1, 1]} : vector<2x4x256xf32> to vector<2x1x256xf32>
    %314 = vector.broadcast %312 : f32 to vector<2x1x256xf32>
    %315 = arith.mulf %314, %313 : vector<2x1x256xf32>
    %316 = arith.addf %311, %315 : vector<2x1x256xf32>
    %cst_76 = arith.constant 0.000000e+00 : f32
    %317 = vector.shape_cast %107 : vector<1x1x256xi1> to vector<1x1x256xi1>
    %318 = vector.broadcast %317 : vector<1x1x256xi1> to vector<2x1x256xi1>
    %319 = vector.broadcast %cst_76 : f32 to vector<2x1x256xf32>
    %320 = arith.select %318, %316, %319 : vector<2x1x256xi1>, vector<2x1x256xf32>
    %321 = arith.addf %296, %320 : vector<2x1x256xf32>
    %c0_77 = arith.constant 0 : index
    %322 = memref.load %arg6[%c0_77] : memref<1xf32, #tpu.memory_space<smem>>
    %323 = vector.broadcast %322 : f32 to vector<2x1x256xf32>
    %324 = arith.addf %321, %323 : vector<2x1x256xf32>
    %cst_78 = arith.constant 0.000000e+00 : f32
    %325 = vector.broadcast %cst_78 : f32 to vector<2x1x256xf32>
    %326 = arith.subf %325, %324 : vector<2x1x256xf32>
    %327 = math.exp %326 : vector<2x1x256xf32>
    %cst_79 = arith.constant 1.000000e+00 : f32
    %328 = vector.broadcast %cst_79 : f32 to vector<2x1x256xf32>
    %329 = arith.addf %328, %327 : vector<2x1x256xf32>
    %cst_80 = arith.constant 1.000000e+00 : f32
    %330 = vector.broadcast %cst_80 : f32 to vector<2x1x256xf32>
    %331 = arith.divf %330, %329 : vector<2x1x256xf32>
    %332 = vector.broadcast %66 : vector<2x16x1xf32> to vector<2x16x256xf32>
    %333 = vector.broadcast %331 : vector<2x1x256xf32> to vector<2x16x256xf32>
    %334 = arith.mulf %332, %333 : vector<2x16x256xf32>
    %cst_81 = arith.constant 1.000000e+00 : f32
    %335 = vector.broadcast %cst_81 : f32 to vector<2x16x256xf32>
    %336 = arith.addf %334, %335 : vector<2x16x256xf32>
    %337 = arith.mulf %0, %336 : vector<2x16x256xf32>
    %c0_82 = arith.constant 0 : index
    %c0_83 = arith.constant 0 : index
    %c0_84 = arith.constant 0 : index
    %338 = vector.load %arg7[%c0_82, %c0_83, %c0_84] : memref<2x16x256xf32, #tpu.memory_space<vmem>>, vector<2x16x256xf32>
    tpu.vector_store %arg7[%c0_82, %c0_83, %c0_84], %337 {strides = array<i32>} : memref<2x16x256xf32, #tpu.memory_space<vmem>>, vector<2x16x256xf32>,
    return
  }
  func.func @transform_0(%arg0: i32) -> (i32, i32, i32) {
    %c0_i32 = arith.constant 0 : i32
    %c0_i32_0 = arith.constant 0 : i32
    %c0_i32_1 = arith.constant 0 : i32
    return %arg0, %c0_i32, %c0_i32_0 : i32, i32, i32
  }
  func.func @transform_1(%arg0: i32) -> (i32, i32) {
    %c0_i32 = arith.constant 0 : i32
    %c0_i32_0 = arith.constant 0 : i32
    %c0_i32_1 = arith.constant 0 : i32
    return %c0_i32, %c0_i32_0 : i32, i32
  }
  func.func @transform_2(%arg0: i32) -> (i32, i32) {
    %c0_i32 = arith.constant 0 : i32
    %c0_i32_0 = arith.constant 0 : i32
    %c0_i32_1 = arith.constant 0 : i32
    return %c0_i32, %c0_i32_0 : i32, i32
  }
  func.func @transform_3(%arg0: i32) -> (i32, i32) {
    %c0_i32 = arith.constant 0 : i32
    %c0_i32_0 = arith.constant 0 : i32
    %c0_i32_1 = arith.constant 0 : i32
    return %c0_i32, %c0_i32_0 : i32, i32
  }
  func.func @transform_4(%arg0: i32) -> i32 {
    %c0_i32 = arith.constant 0 : i32
    %c0_i32_0 = arith.constant 0 : i32
    return %c0_i32 : i32
  }
  func.func @transform_5(%arg0: i32) -> i32 {
    %c0_i32 = arith.constant 0 : i32
    %c0_i32_0 = arith.constant 0 : i32
    return %c0_i32 : i32
  }
  func.func @transform_6(%arg0: i32) -> (i32, i32, i32) {
    %c0_i32 = arith.constant 0 : i32
    %c0_i32_0 = arith.constant 0 : i32
    %c0_i32_1 = arith.constant 0 : i32
    return %arg0, %c0_i32, %c0_i32_0 : i32, i32, i32
  }
}

</mosaic_0001>

<llo_original>
// kernel: tpu_custom_call.1
$region0: #{tpu_custom_call.1}
  #allocation0 [shape = 'u32[]', space=smem, size = 0x4, offset = 0x4, fixed_abs, tag = 'smem constant byte address 0x4 - core index']
  #allocation1 [shape = 'u32[144,128]{1,0:T(1,128)}', space=vmem, size = 0x12000, scoped, tag = 'internal scratch']
  #allocation2 [shape = 'f32[2,4,401]{2,1,0:T(4,128)}', space=vmem, size = 0x4000, scoped, tag = 'scratch operand']
  #allocation3 [shape = 'f32[1]{0:T(128)S(6)}', space=smem, size = 0x200, scoped, tag = 'scoped memory for tpu_custom_call.1']
  %s0 = inlined_call_operand.vmem [shape: f32[2,16,256], index: 0, kind: input, shape index: {}]
  %s1 = inlined_call_operand.vmem [shape: f32[32,8], index: 1, kind: input, shape index: {}]
  %s2 = inlined_call_operand.vmem [shape: f32[16,8], index: 2, kind: input, shape index: {}]
  %s3 = inlined_call_operand.vmem [shape: f32[16,1], index: 3, kind: input, shape index: {}]
  %s4 = inlined_call_operand.vmem [shape: f32[36], index: 4, kind: input, shape index: {}]
  %s5 = inlined_call_operand.<no memory space> [shape: f32[1], index: 5, kind: input, shape index: {}]
  %s6 = inlined_call_operand.hbm [shape: f32[2,16,256], index: 6, kind: output, shape index: {}]
  %s7 = sld [smem:[#allocation0]]
  $region38: #{tpu_custom_call.1} parent=0
    _
  %s9 = ssub.s32 1, %s7
  %s10 = scalar_select 0, %s9, %s7
  %11 = sst [smem:[#allocation3]] %s5
  $region1: #{tpu_custom_call.1} parent=0
    #allocation4 [shape = 'u8[512]{0}', space=smem, size = 0x200, scoped, tag = 'input window, operand 4, single buffered']
    #allocation5 [shape = 's32[1]{0}', space=sflag, size = 0x4, scoped, tag = 'scoped memory for tpu_custom_call.1']
    #allocation6 [shape = 's32[1]{0}', space=sflag, size = 0x4, scoped, tag = 'scoped memory for tpu_custom_call.1']
    #allocation7 [shape = 'u8[32768]{0}', space=vmem, size = 0x8000, scoped, tag = 'output window, operand 0, single buffered']
    %12 = vsyncpa [#allocation6], 0
    %13 = vsyncpa [#allocation5], 0
    // Predicated region
    $region2: #{tpu_custom_call.1} parent=1 // pred_check
      _
    $region3: #{tpu_custom_call.1} parent=1 // pred_check_branch
      %15 = sbr.rel (0) target = $region5
    $region4: #{tpu_custom_call.1} parent=1 // pred_region
      _
    $region5: #{tpu_custom_call.1} parent=1 // pred_fallthru
      _
    // Predicated region
    $region6: #{tpu_custom_call.1} parent=1 // pred_check
      _
    $region7: #{tpu_custom_call.1} parent=1 // pred_check_branch
      %17 = sbr.rel (0) target = $region9
    $region8: #{tpu_custom_call.1} parent=1 // pred_region
      _
    $region9: #{tpu_custom_call.1} parent=1 // pred_fallthru
      _
    // Predicated region
    $region10: #{tpu_custom_call.1} parent=1 // pred_check
      _
    $region11: #{tpu_custom_call.1} parent=1 // pred_check_branch
      %19 = sbr.rel (0) target = $region13
    $region12: #{tpu_custom_call.1} parent=1 // pred_region
      _
    $region13: #{tpu_custom_call.1} parent=1 // pred_fallthru
      _
    // Predicated region
    $region14: #{tpu_custom_call.1} parent=1 // pred_check
      _
    $region15: #{tpu_custom_call.1} parent=1 // pred_check_branch
      %21 = sbr.rel (0) target = $region17
    $region16: #{tpu_custom_call.1} parent=1 // pred_region
      _
    $region17: #{tpu_custom_call.1} parent=1 // pred_fallthru
      _
    // Predicated region
    $region18: #{tpu_custom_call.1} parent=1 // pred_check
      _
    $region19: #{tpu_custom_call.1} parent=1 // pred_check_branch
      %23 = sbr.rel (0) target = $region21
    $region20: #{tpu_custom_call.1} parent=1 // pred_region
      %s25 = ssub.s32 16, 16
      %26 = vsyncadd [#allocation6], %s25
      %s28 = sshll.u32 %s4, 4
      %s29 = int_to_ptr.vmem [resolvable:$true] %s28
      %31 = dma.vmem_to_smem %s29, 16, [#allocation4], [#allocation6]
    $region21: #{tpu_custom_call.1} parent=1 // pred_fallthru
      _
    // Predicated region
    $region22: #{tpu_custom_call.1} parent=1 // pred_check
      _
    $region23: #{tpu_custom_call.1} parent=1 // pred_check_branch
      %33 = sbr.rel (0) target = $region25
    $region24: #{tpu_custom_call.1} parent=1 // pred_region
      _
    $region25: #{tpu_custom_call.1} parent=1 // pred_fallthru
      _
    // Predicated region
    $region26: #{tpu_custom_call.1} parent=1 // pred_check
      _
    $region27: #{tpu_custom_call.1} parent=1 // pred_check_branch
      %35 = sbr.rel (0) target = $region29
    $region28: #{tpu_custom_call.1} parent=1 // pred_region
      %36 = dma.done [#allocation6], 16
    $region29: #{tpu_custom_call.1} parent=1 // pred_fallthru
      _
    %37 = sfence
    %v38 = vld [vmem:[%s0] sm:$0xff]
    %v39 = vld [vmem:[%s0 + $0x8] sm:$0xff]
    %v40 = vld [vmem:[%s0 + $0x10] sm:$0xff]
    %v41 = vld [vmem:[%s0 + $0x18] sm:$0xff]
    %v42 = vld [vmem:[%s0 + $0x20] sm:$0xff]
    %v43 = vld [vmem:[%s0 + $0x28] sm:$0xff]
    %v44 = vld [vmem:[%s0 + $0x30] sm:$0xff]
    %v45 = vld [vmem:[%s0 + $0x38] sm:$0xff]
    %v46 = vadd.f32 %v38, %v39
    %47 = vadd.xlane.f32.xlu0 %v46
    %v48 = vpop.xlane.xlu0 %47
    %v49 = vadd.f32 %v42, %v43
    %50 = vadd.xlane.f32.xlu0 %v49
    %v51 = vpop.xlane.xlu0 %50
    %v52 = vrcp.pop 256.0
    %v53 = vmul.f32 %v48, %v52
    %v54 = vmul.f32 %v51, %v52
    %v55 = vmax.f32 %v38, %v39
    %56 = vmax.xlane.f32.xlu0 %v55
    %v57 = vpop.xlane.xlu0 %56
    %v58 = vmax.f32 %v42, %v43
    %59 = vmax.xlane.f32.xlu0 %v58
    %v60 = vpop.xlane.xlu0 %59
    %v61 = vadd.f32 %v40, %v41
    %62 = vadd.xlane.f32.xlu0 %v61
    %v63 = vpop.xlane.xlu0 %62
    %v64 = vadd.f32 %v44, %v45
    %65 = vadd.xlane.f32.xlu0 %v64
    %v66 = vpop.xlane.xlu0 %65
    %v67 = vmul.f32 %v63, %v52
    %v68 = vmul.f32 %v66, %v52
    %v69 = vmax.f32 %v40, %v41
    %70 = vmax.xlane.f32.xlu0 %v69
    %v71 = vpop.xlane.xlu0 %70
    %v72 = vmax.f32 %v44, %v45
    %73 = vmax.xlane.f32.xlu0 %v72
    %v74 = vpop.xlane.xlu0 %73
    %v75 = vld [vmem:[%s1] sm:$0xff]
    %v76 = vld [vmem:[%s1 + $0x8] sm:$0xff]
    %v77 = vld [vmem:[%s1 + $0x10] sm:$0xff]
    %v78 = vld [vmem:[%s1 + $0x18] sm:$0xff]
    %v79 = vmul.f32 %v75, %v53
    %v80 = vmul.f32 %v75, %v54
    %vm81 = vcmask 64512
    %v82 = vsel %vm81, %v79, 0.0
    %v83 = vrot.slane %v82, 4
    %v84 = vadd.f32 %v82, %v83
    %v85 = vrot.slane %v84, 2
    %v86 = vadd.f32 %v84, %v85
    %v87 = vrot.slane %v86, 1
    %v88 = vadd.f32 %v86, %v87
    %v89 = vsel %vm81, %v80, 0.0
    %v90 = vrot.slane %v89, 4
    %v91 = vadd.f32 %v89, %v90
    %v92 = vrot.slane %v91, 2
    %v93 = vadd.f32 %v91, %v92
    %v94 = vrot.slane %v93, 1
    %v95 = vadd.f32 %v93, %v94
    %v96 = vmul.f32 %v76, %v67
    %v97 = vmul.f32 %v76, %v68
    %v98 = vsel %vm81, %v96, 0.0
    %v99 = vrot.slane %v98, 4
    %v100 = vadd.f32 %v98, %v99
    %v101 = vrot.slane %v100, 2
    %v102 = vadd.f32 %v100, %v101
    %v103 = vrot.slane %v102, 1
    %v104 = vadd.f32 %v102, %v103
    %v105 = vsel %vm81, %v97, 0.0
    %v106 = vrot.slane %v105, 4
    %v107 = vadd.f32 %v105, %v106
    %v108 = vrot.slane %v107, 2
    %v109 = vadd.f32 %v107, %v108
    %v110 = vrot.slane %v109, 1
    %v111 = vadd.f32 %v109, %v110
    %v112 = vadd.f32 %v88, %v104
    %v113 = vadd.f32 %v95, %v111
    %v114 = vmul.f32 %v77, %v57
    %v115 = vmul.f32 %v77, %v60
    %v116 = vsel %vm81, %v114, 0.0
    %v117 = vrot.slane %v116, 4
    %v118 = vadd.f32 %v116, %v117
    %v119 = vrot.slane %v118, 2
    %v120 = vadd.f32 %v118, %v119
    %v121 = vrot.slane %v120, 1
    %v122 = vadd.f32 %v120, %v121
    %v123 = vsel %vm81, %v115, 0.0
    %v124 = vrot.slane %v123, 4
    %v125 = vadd.f32 %v123, %v124
    %v126 = vrot.slane %v125, 2
    %v127 = vadd.f32 %v125, %v126
    %v128 = vrot.slane %v127, 1
    %v129 = vadd.f32 %v127, %v128
    %v130 = vadd.f32 %v112, %v122
    %v131 = vadd.f32 %v113, %v129
    %v132 = vmul.f32 %v78, %v71
    %v133 = vmul.f32 %v78, %v74
    %v134 = vsel %vm81, %v132, 0.0
    %v135 = vrot.slane %v134, 4
    %v136 = vadd.f32 %v134, %v135
    %v137 = vrot.slane %v136, 2
    %v138 = vadd.f32 %v136, %v137
    %v139 = vrot.slane %v138, 1
    %v140 = vadd.f32 %v138, %v139
    %v141 = vsel %vm81, %v133, 0.0
    %v142 = vrot.slane %v141, 4
    %v143 = vadd.f32 %v141, %v142
    %v144 = vrot.slane %v143, 2
    %v145 = vadd.f32 %v143, %v144
    %v146 = vrot.slane %v145, 1
    %v147 = vadd.f32 %v145, %v146
    %v148 = vadd.f32 %v130, %v140
    %v149 = vadd.f32 %v131, %v147
    %v150 = vmax.f32 %v148, 0.0
    %v151 = vmax.f32 %v149, 0.0
    %v152 = vld [vmem:[%s2] sm:$0xff]
    %v153 = vld [vmem:[%s2 + $0x8] sm:$0xff]
    %v154 = vmul.f32 %v152, %v150
    %v155 = vmul.f32 %v153, %v150
    %v156 = vmul.f32 %v152, %v151
    %v157 = vmul.f32 %v153, %v151
    %v158 = vsel %vm81, %v154, 0.0
    %159 = vadd.xlane.f32.xlu0 %v158
    %v160 = vpop.xlane.xlu0 %159
    %v161 = vsel %vm81, %v155, 0.0
    %162 = vadd.xlane.f32.xlu0 %v161
    %v163 = vpop.xlane.xlu0 %162
    %v164 = vsel %vm81, %v156, 0.0
    %165 = vadd.xlane.f32.xlu0 %v164
    %v166 = vpop.xlane.xlu0 %165
    %v167 = vsel %vm81, %v157, 0.0
    %168 = vadd.xlane.f32.xlu0 %v167
    %v169 = vpop.xlane.xlu0 %168
    %v170 = vld [vmem:[%s3] sm:$0xff]
    %v171 = vld [vmem:[%s3 + $0x8] sm:$0xff]
    %v172 = vadd.f32 %v160, %v170
    %v173 = vadd.f32 %v163, %v171
    %v174 = vadd.f32 %v166, %v170
    %v175 = vadd.f32 %v169, %v171
    %v176 = vsub.f32 0.0, %v172
    %v177 = vsub.f32 0.0, %v173
    %v178 = vsub.f32 0.0, %v174
    %v179 = vsub.f32 0.0, %v175
    %v180 = vmul.f32 %v176, 1.442695
    %v181 = vpow.pop %v180
    %v182 = vmul.f32 %v177, 1.442695
    %v183 = vpow.pop %v182
    %v184 = vmul.f32 %v178, 1.442695
    %v185 = vpow.pop %v184
    %v186 = vmul.f32 %v179, 1.442695
    %v187 = vpow.pop %v186
    %v188 = vadd.f32 %v181, 1.0
    %v189 = vadd.f32 %v183, 1.0
    %v190 = vadd.f32 %v185, 1.0
    %v191 = vadd.f32 %v187, 1.0
    %v192 = vrcp.pop %v188
    %v193 = vmul.f32 1.0, %v192
    %v194 = vrcp.pop %v189
    %v195 = vmul.f32 1.0, %v194
    %v196 = vrcp.pop %v190
    %v197 = vmul.f32 1.0, %v196
    %v198 = vrcp.pop %v191
    %v199 = vmul.f32 1.0, %v198
    %vm200 = vcmask 1044344
    %201 = vst.msk [vmem:[#allocation2] sm:$0xf] %vm200, 0.0
    %202 = vst.msk [vmem:[#allocation2 + $0x10] sm:$0xf] %vm200, 0.0
    %vm203 = vcmask 134144
    %204 = vst.msk [vmem:[#allocation2 + $0xc] sm:$0xf] %vm203, 0.0
    %205 = vst.msk [vmem:[#allocation2 + $0x1c] sm:$0xf] %vm203, 0.0
    %v206 = vrot.slane %v38, 4
    %v207 = vadd.f32 %v38, %v206
    %v208 = vrot.slane %v207, 2
    %v209 = vadd.f32 %v207, %v208
    %v210 = vrot.slane %v209, 1
    %v211 = vadd.f32 %v209, %v210
    %v212 = vrot.slane %v39, 4
    %v213 = vadd.f32 %v39, %v212
    %v214 = vrot.slane %v213, 2
    %v215 = vadd.f32 %v213, %v214
    %v216 = vrot.slane %v215, 1
    %v217 = vadd.f32 %v215, %v216
    %v218 = vrot.slane %v42, 4
    %v219 = vadd.f32 %v42, %v218
    %v220 = vrot.slane %v219, 2
    %v221 = vadd.f32 %v219, %v220
    %v222 = vrot.slane %v221, 1
    %v223 = vadd.f32 %v221, %v222
    %v224 = vrot.slane %v43, 4
    %v225 = vadd.f32 %v43, %v224
    %v226 = vrot.slane %v225, 2
    %v227 = vadd.f32 %v225, %v226
    %v228 = vrot.slane %v227, 1
    %v229 = vadd.f32 %v227, %v228
    %v230 = vrcp.pop 8.0
    %v231 = vmul.f32 %v211, %v230
    %v232 = vmul.f32 %v217, %v230
    %v233 = vmul.f32 %v223, %v230
    %v234 = vmul.f32 %v229, %v230
    %v239 = vcombine.low %v231, %v232
    %v241 = vunpack.c.l.s4 1966171168
    %v242 = vunpack.c.0.s8 %v241
    %v243 = vlaneseq
    %v244 = vshrl.u32 %v243, 7
    %v245 = vsub.s32 %v242, %v244
    %v246 = vrot.slane %v239, %v245
    %v248 = vunpack.c.l.s4 1966171168
    %v249 = vunpack.c.0.s8 %v248
    %v250 = vlaneseq
    %v251 = vshrl.u32 %v250, 7
    %v252 = vsub.s32 %v249, %v251
    %v253 = vrot.slane %v246, %v252
    %v254 = vcombine.low %v233, %v234
    %v256 = vunpack.c.l.s4 1966171168
    %v257 = vunpack.c.0.s8 %v256
    %v258 = vlaneseq
    %v259 = vshrl.u32 %v258, 7
    %v260 = vsub.s32 %v257, %v259
    %v261 = vrot.slane %v254, %v260
    %v263 = vunpack.c.l.s4 1966171168
    %v264 = vunpack.c.0.s8 %v263
    %v265 = vlaneseq
    %v266 = vshrl.u32 %v265, 7
    %v267 = vsub.s32 %v264, %v266
    %v268 = vrot.slane %v261, %v267
    %v271 = vlaneseq
    %vm272 = vcmp.ge.s32.totalorder %v271, 0
    %vm273 = vcmp.lt.s32.totalorder %v271, 256
    %vm274 = vmand %vm272, %vm273
    %s275 = scalar_lea.vmem [#allocation2], 4
    %276 = vst.msk [vmem:[%s275] ss:$4 sm:$0x3] %vm274, %v253
    %s277 = scalar_lea.vmem [#allocation2], 20
    %278 = vst.msk [vmem:[%s277] ss:$4 sm:$0x3] %vm274, %v268
    %v279 = vrot.slane %v40, 4
    %v280 = vadd.f32 %v40, %v279
    %v281 = vrot.slane %v280, 2
    %v282 = vadd.f32 %v280, %v281
    %v283 = vrot.slane %v282, 1
    %v284 = vadd.f32 %v282, %v283
    %v285 = vrot.slane %v41, 4
    %v286 = vadd.f32 %v41, %v285
    %v287 = vrot.slane %v286, 2
    %v288 = vadd.f32 %v286, %v287
    %v289 = vrot.slane %v288, 1
    %v290 = vadd.f32 %v288, %v289
    %v291 = vrot.slane %v44, 4
    %v292 = vadd.f32 %v44, %v291
    %v293 = vrot.slane %v292, 2
    %v294 = vadd.f32 %v292, %v293
    %v295 = vrot.slane %v294, 1
    %v296 = vadd.f32 %v294, %v295
    %v297 = vrot.slane %v45, 4
    %v298 = vadd.f32 %v45, %v297
    %v299 = vrot.slane %v298, 2
    %v300 = vadd.f32 %v298, %v299
    %v301 = vrot.slane %v300, 1
    %v302 = vadd.f32 %v300, %v301
    %v303 = vmul.f32 %v284, %v230
    %v304 = vmul.f32 %v290, %v230
    %v305 = vmul.f32 %v296, %v230
    %v306 = vmul.f32 %v302, %v230
    %v311 = vcombine.low %v303, %v304
    %v313 = vunpack.c.l.s4 1966171168
    %v314 = vunpack.c.0.s8 %v313
    %v315 = vlaneseq
    %v316 = vshrl.u32 %v315, 7
    %v317 = vsub.s32 %v314, %v316
    %v318 = vrot.slane %v311, %v317
    %v320 = vunpack.c.l.s4 1966171168
    %v321 = vunpack.c.0.s8 %v320
    %v322 = vlaneseq
    %v323 = vshrl.u32 %v322, 7
    %v324 = vsub.s32 %v321, %v323
    %v325 = vrot.slane %v318, %v324
    %v326 = vcombine.low %v305, %v306
    %v328 = vunpack.c.l.s4 1966171168
    %v329 = vunpack.c.0.s8 %v328
    %v330 = vlaneseq
    %v331 = vshrl.u32 %v330, 7
    %v332 = vsub.s32 %v329, %v331
    %v333 = vrot.slane %v326, %v332
    %v335 = vunpack.c.l.s4 1966171168
    %v336 = vunpack.c.0.s8 %v335
    %v337 = vlaneseq
    %v338 = vshrl.u32 %v337, 7
    %v339 = vsub.s32 %v336, %v338
    %v340 = vrot.slane %v333, %v339
    %s343 = scalar_lea.vmem [#allocation2], 5
    %344 = vst.msk [vmem:[%s343] ss:$4 sm:$0x3] %vm274, %v325
    %s345 = scalar_lea.vmem [#allocation2], 21
    %346 = vst.msk [vmem:[%s345] ss:$4 sm:$0x3] %vm274, %v340
    %v347 = vrot.slane %v38, 4
    %v348 = vmax.f32 %v38, %v347
    %v349 = vrot.slane %v348, 2
    %v350 = vmax.f32 %v348, %v349
    %v351 = vrot.slane %v350, 1
    %v352 = vmax.f32 %v350, %v351
    %v353 = vrot.slane %v39, 4
    %v354 = vmax.f32 %v39, %v353
    %v355 = vrot.slane %v354, 2
    %v356 = vmax.f32 %v354, %v355
    %v357 = vrot.slane %v356, 1
    %v358 = vmax.f32 %v356, %v357
    %v359 = vrot.slane %v42, 4
    %v360 = vmax.f32 %v42, %v359
    %v361 = vrot.slane %v360, 2
    %v362 = vmax.f32 %v360, %v361
    %v363 = vrot.slane %v362, 1
    %v364 = vmax.f32 %v362, %v363
    %v365 = vrot.slane %v43, 4
    %v366 = vmax.f32 %v43, %v365
    %v367 = vrot.slane %v366, 2
    %v368 = vmax.f32 %v366, %v367
    %v369 = vrot.slane %v368, 1
    %v370 = vmax.f32 %v368, %v369
    %v375 = vcombine.low %v352, %v358
    %v377 = vunpack.c.l.s4 1966171168
    %v378 = vunpack.c.0.s8 %v377
    %v379 = vlaneseq
    %v380 = vshrl.u32 %v379, 7
    %v381 = vsub.s32 %v378, %v380
    %v382 = vrot.slane %v375, %v381
    %v384 = vunpack.c.l.s4 1966171168
    %v385 = vunpack.c.0.s8 %v384
    %v386 = vlaneseq
    %v387 = vshrl.u32 %v386, 7
    %v388 = vsub.s32 %v385, %v387
    %v389 = vrot.slane %v382, %v388
    %v390 = vcombine.low %v364, %v370
    %v392 = vunpack.c.l.s4 1966171168
    %v393 = vunpack.c.0.s8 %v392
    %v394 = vlaneseq
    %v395 = vshrl.u32 %v394, 7
    %v396 = vsub.s32 %v393, %v395
    %v397 = vrot.slane %v390, %v396
    %v399 = vunpack.c.l.s4 1966171168
    %v400 = vunpack.c.0.s8 %v399
    %v401 = vlaneseq
    %v402 = vshrl.u32 %v401, 7
    %v403 = vsub.s32 %v400, %v402
    %v404 = vrot.slane %v397, %v403
    %s407 = scalar_lea.vmem [#allocation2], 6
    %408 = vst.msk [vmem:[%s407] ss:$4 sm:$0x3] %vm274, %v389
    %s409 = scalar_lea.vmem [#allocation2], 22
    %410 = vst.msk [vmem:[%s409] ss:$4 sm:$0x3] %vm274, %v404
    %v411 = vrot.slane %v40, 4
    %v412 = vmax.f32 %v40, %v411
    %v413 = vrot.slane %v412, 2
    %v414 = vmax.f32 %v412, %v413
    %v415 = vrot.slane %v414, 1
    %v416 = vmax.f32 %v414, %v415
    %v417 = vrot.slane %v41, 4
    %v418 = vmax.f32 %v41, %v417
    %v419 = vrot.slane %v418, 2
    %v420 = vmax.f32 %v418, %v419
    %v421 = vrot.slane %v420, 1
    %v422 = vmax.f32 %v420, %v421
    %v423 = vrot.slane %v44, 4
    %v424 = vmax.f32 %v44, %v423
    %v425 = vrot.slane %v424, 2
    %v426 = vmax.f32 %v424, %v425
    %v427 = vrot.slane %v426, 1
    %v428 = vmax.f32 %v426, %v427
    %v429 = vrot.slane %v45, 4
    %v430 = vmax.f32 %v45, %v429
    %v431 = vrot.slane %v430, 2
    %v432 = vmax.f32 %v430, %v431
    %v433 = vrot.slane %v432, 1
    %v434 = vmax.f32 %v432, %v433
    %v439 = vcombine.low %v416, %v422
    %v441 = vunpack.c.l.s4 1966171168
    %v442 = vunpack.c.0.s8 %v441
    %v443 = vlaneseq
    %v444 = vshrl.u32 %v443, 7
    %v445 = vsub.s32 %v442, %v444
    %v446 = vrot.slane %v439, %v445
    %v448 = vunpack.c.l.s4 1966171168
    %v449 = vunpack.c.0.s8 %v448
    %v450 = vlaneseq
    %v451 = vshrl.u32 %v450, 7
    %v452 = vsub.s32 %v449, %v451
    %v453 = vrot.slane %v446, %v452
    %v454 = vcombine.low %v428, %v434
    %v456 = vunpack.c.l.s4 1966171168
    %v457 = vunpack.c.0.s8 %v456
    %v458 = vlaneseq
    %v459 = vshrl.u32 %v458, 7
    %v460 = vsub.s32 %v457, %v459
    %v461 = vrot.slane %v454, %v460
    %v463 = vunpack.c.l.s4 1966171168
    %v464 = vunpack.c.0.s8 %v463
    %v465 = vlaneseq
    %v466 = vshrl.u32 %v465, 7
    %v467 = vsub.s32 %v464, %v466
    %v468 = vrot.slane %v461, %v467
    %s471 = scalar_lea.vmem [#allocation2], 7
    %472 = vst.msk [vmem:[%s471] ss:$4 sm:$0x3] %vm274, %v453
    %s473 = scalar_lea.vmem [#allocation2], 23
    %474 = vst.msk [vmem:[%s473] ss:$4 sm:$0x3] %vm274, %v468
    %v475 = vlaneseq
    %v476 = vand.u32 %v475, 127
    %v477 = vadd.s32 %v476, 128
    %vm478 = vcmp.lt.s32.totalorder %v476, 0
    %v479 = vsub.s32 0, %v476
    %v480 = vsel %vm478, %v479, %v476
    %v481 = vshrl.u32 %v480, 4
    %v482 = vand.u32 %v480, 15
    %v483 = vsub.s32 0, %v482
    %v484 = vsel %vm478, %v483, %v482
    %vm485 = vcmp.lt.s32.totalorder %v477, 0
    %v486 = vsub.s32 0, %v477
    %v487 = vsel %vm485, %v486, %v477
    %v488 = vshrl.u32 %v487, 4
    %v489 = vand.u32 %v487, 15
    %v490 = vsub.s32 0, %v489
    %v491 = vsel %vm485, %v490, %v489
    %vm492 = vcmp.ne.s32.totalorder %v484, 0
    %vm493 = vcmp.ne.s32.totalorder %v491, 0
    %vm494 = vcmp.lt.s32.totalorder %v484, 0
    %vm495 = vcmp.lt.s32.totalorder %v491, 0
    %vm496 = vmand %vm494, %vm492
    %vm497 = vmand %vm495, %vm493
    %v498 = vadd.s32 %v484, 16
    %v499 = vadd.s32 %v491, 16
    %v500 = vsel %vm496, %v498, %v484
    %v501 = vsel %vm497, %v499, %v491
    %vm502 = vcmp.ge.s32.totalorder %v500, 1
    %vm503 = vcmp.ge.s32.totalorder %v501, 1
    %vm504 = vcmp.le.s32.totalorder %v500, 14
    %vm505 = vcmp.le.s32.totalorder %v501, 14
    %v506 = vld [vmem:[#allocation2] sm:$0xff]
    %v507 = vld [vmem:[#allocation2 + $0x8] sm:$0xf]
    %v508 = vld [vmem:[#allocation2 + $0x10] sm:$0xff]
    %v509 = vld [vmem:[#allocation2 + $0x18] sm:$0xf]
    %s510 = sld [smem:[#allocation4]]
    %v511 = vstv %s510
    %v512 = vmul.f32 %v511, %v506
    %v513 = vmul.f32 %v511, %v507
    %v514 = vmul.f32 %v511, %v508
    %v515 = vmul.f32 %v511, %v509
    %s516 = sld [smem:[#allocation4 + $0x9]]
    %v517 = vstv %s516
    %v518 = vmul.f32 %v517, %v506
    %v519 = vmul.f32 %v517, %v507
    %v520 = vmul.f32 %v517, %v508
    %v521 = vmul.f32 %v517, %v509
    %v526 = vrot.slane %v518, 5
    %v527 = vrot.slane %v526, 4
    %v528 = vrot.slane %v519, 5
    %v529 = vrot.slane %v528, 4
    %v530 = vrot.slane %v520, 5
    %v531 = vrot.slane %v530, 4
    %v532 = vrot.slane %v521, 5
    %v533 = vrot.slane %v532, 4
    %v538 = vadd.f32 %v512, %v527
    %v539 = vadd.f32 %v513, %v529
    %v540 = vadd.f32 %v514, %v531
    %v541 = vadd.f32 %v515, %v533
    %s542 = sld [smem:[#allocation4 + $0x12]]
    %v543 = vstv %s542
    %v544 = vmul.f32 %v543, %v506
    %v545 = vmul.f32 %v543, %v507
    %v546 = vmul.f32 %v543, %v508
    %v547 = vmul.f32 %v543, %v509
    %v552 = vrot.slane %v544, 6
    %v553 = vrot.slane %v552, 4
    %v554 = vrot.slane %v545, 6
    %v555 = vrot.slane %v554, 4
    %v556 = vrot.slane %v546, 6
    %v557 = vrot.slane %v556, 4
    %v558 = vrot.slane %v547, 6
    %v559 = vrot.slane %v558, 4
    %v564 = vadd.f32 %v538, %v553
    %v565 = vadd.f32 %v539, %v555
    %v566 = vadd.f32 %v540, %v557
    %v567 = vadd.f32 %v541, %v559
    %s568 = sld [smem:[#allocation4 + $0x1b]]
    %v569 = vstv %s568
    %v570 = vmul.f32 %v569, %v506
    %v571 = vmul.f32 %v569, %v507
    %v572 = vmul.f32 %v569, %v508
    %v573 = vmul.f32 %v569, %v509
    %v578 = vrot.slane %v570, 7
    %v579 = vrot.slane %v578, 4
    %v580 = vrot.slane %v571, 7
    %v581 = vrot.slane %v580, 4
    %v582 = vrot.slane %v572, 7
    %v583 = vrot.slane %v582, 4
    %v584 = vrot.slane %v573, 7
    %v585 = vrot.slane %v584, 4
    %v590 = vadd.f32 %v564, %v579
    %v591 = vadd.f32 %v565, %v581
    %v592 = vadd.f32 %v566, %v583
    %v593 = vadd.f32 %v567, %v585
    %v594 = vsel %vm502, 1, 0
    %v595 = vsel %vm503, 1, 0
    %vm596 = vcmp.eq.s32.totalorder %v594, 1
    %vm597 = vcmp.eq.s32.totalorder %v595, 1
    %v602 = vlaneseq
    %v603 = vshrl.u32 %v602, 7
    %v604 = vsub.s32 0, %v603
    %v605 = vrot.slane %v590, %v604
    %v606 = vlaneseq
    %v607 = vshrl.u32 %v606, 7
    %v608 = vsub.s32 4, %v607
    %v609 = vrot.slane %v590, %v608
    %v610 = vlaneseq
    %v611 = vshrl.u32 %v610, 7
    %v612 = vsub.s32 0, %v611
    %v613 = vrot.slane %v591, %v612
    %v614 = vlaneseq
    %v615 = vshrl.u32 %v614, 7
    %v616 = vsub.s32 0, %v615
    %v617 = vrot.slane %v592, %v616
    %v618 = vlaneseq
    %v619 = vshrl.u32 %v618, 7
    %v620 = vsub.s32 4, %v619
    %v621 = vrot.slane %v592, %v620
    %v622 = vlaneseq
    %v623 = vshrl.u32 %v622, 7
    %v624 = vsub.s32 0, %v623
    %v625 = vrot.slane %v593, %v624
    %626 = vrot.lane.b32.xlu0 %v605, 17
    %v627 = vpop.permute.xlu0 %626
    %628 = vrot.lane.b32.xlu0 %v609, 17
    %v629 = vpop.permute.xlu0 %628
    %630 = vrot.lane.b32.xlu0 %v613, 17
    %v631 = vpop.permute.xlu0 %630
    %632 = vrot.lane.b32.xlu0 %v617, 17
    %v633 = vpop.permute.xlu0 %632
    %634 = vrot.lane.b32.xlu0 %v621, 17
    %v635 = vpop.permute.xlu0 %634
    %636 = vrot.lane.b32.xlu0 %v625, 17
    %v637 = vpop.permute.xlu0 %636
    %vm638 = vcmask 138240
    %v639 = vsel %vm638, %v627, %v629
    %v640 = vsel %vm638, %v629, %v631
    %v641 = vsel %vm638, %v633, %v635
    %v642 = vsel %vm638, %v635, %v637
    %v647 = vsel %vm596, %v639, 0.0
    %v648 = vsel %vm597, %v640, 0.0
    %v649 = vsel %vm596, %v641, 0.0
    %v650 = vsel %vm597, %v642, 0.0
    %v651 = vadd.f32 %v647, 0.0
    %v652 = vadd.f32 %v648, 0.0
    %v653 = vadd.f32 %v649, 0.0
    %v654 = vadd.f32 %v650, 0.0
    %s655 = sld [smem:[#allocation4 + $0x1]]
    %v656 = vstv %s655
    %v657 = vmul.f32 %v656, %v506
    %v658 = vmul.f32 %v656, %v507
    %v659 = vmul.f32 %v656, %v508
    %v660 = vmul.f32 %v656, %v509
    %s661 = sld [smem:[#allocation4 + $0xa]]
    %v662 = vstv %s661
    %v663 = vmul.f32 %v662, %v506
    %v664 = vmul.f32 %v662, %v507
    %v665 = vmul.f32 %v662, %v508
    %v666 = vmul.f32 %v662, %v509
    %v671 = vrot.slane %v663, 5
    %v672 = vrot.slane %v671, 4
    %v673 = vrot.slane %v664, 5
    %v674 = vrot.slane %v673, 4
    %v675 = vrot.slane %v665, 5
    %v676 = vrot.slane %v675, 4
    %v677 = vrot.slane %v666, 5
    %v678 = vrot.slane %v677, 4
    %v683 = vadd.f32 %v657, %v672
    %v684 = vadd.f32 %v658, %v674
    %v685 = vadd.f32 %v659, %v676
    %v686 = vadd.f32 %v660, %v678
    %s687 = sld [smem:[#allocation4 + $0x13]]
    %v688 = vstv %s687
    %v689 = vmul.f32 %v688, %v506
    %v690 = vmul.f32 %v688, %v507
    %v691 = vmul.f32 %v688, %v508
    %v692 = vmul.f32 %v688, %v509
    %v697 = vrot.slane %v689, 6
    %v698 = vrot.slane %v697, 4
    %v699 = vrot.slane %v690, 6
    %v700 = vrot.slane %v699, 4
    %v701 = vrot.slane %v691, 6
    %v702 = vrot.slane %v701, 4
    %v703 = vrot.slane %v692, 6
    %v704 = vrot.slane %v703, 4
    %v709 = vadd.f32 %v683, %v698
    %v710 = vadd.f32 %v684, %v700
    %v711 = vadd.f32 %v685, %v702
    %v712 = vadd.f32 %v686, %v704
    %s713 = sld [smem:[#allocation4 + $0x1c]]
    %v714 = vstv %s713
    %v715 = vmul.f32 %v714, %v506
    %v716 = vmul.f32 %v714, %v507
    %v717 = vmul.f32 %v714, %v508
    %v718 = vmul.f32 %v714, %v509
    %v723 = vrot.slane %v715, 7
    %v724 = vrot.slane %v723, 4
    %v725 = vrot.slane %v716, 7
    %v726 = vrot.slane %v725, 4
    %v727 = vrot.slane %v717, 7
    %v728 = vrot.slane %v727, 4
    %v729 = vrot.slane %v718, 7
    %v730 = vrot.slane %v729, 4
    %v735 = vadd.f32 %v709, %v724
    %v736 = vadd.f32 %v710, %v726
    %v737 = vadd.f32 %v711, %v728
    %v738 = vadd.f32 %v712, %v730
    %v743 = vlaneseq
    %v744 = vshrl.u32 %v743, 7
    %v745 = vsub.s32 0, %v744
    %v746 = vrot.slane %v735, %v745
    %v747 = vlaneseq
    %v748 = vshrl.u32 %v747, 7
    %v749 = vsub.s32 4, %v748
    %v750 = vrot.slane %v735, %v749
    %v751 = vlaneseq
    %v752 = vshrl.u32 %v751, 7
    %v753 = vsub.s32 0, %v752
    %v754 = vrot.slane %v736, %v753
    %v755 = vlaneseq
    %v756 = vshrl.u32 %v755, 7
    %v757 = vsub.s32 0, %v756
    %v758 = vrot.slane %v737, %v757
    %v759 = vlaneseq
    %v760 = vshrl.u32 %v759, 7
    %v761 = vsub.s32 4, %v760
    %v762 = vrot.slane %v737, %v761
    %v763 = vlaneseq
    %v764 = vshrl.u32 %v763, 7
    %v765 = vsub.s32 0, %v764
    %v766 = vrot.slane %v738, %v765
    %767 = vrot.lane.b32.xlu0 %v746, 16
    %v768 = vpop.permute.xlu0 %767
    %769 = vrot.lane.b32.xlu0 %v750, 16
    %v770 = vpop.permute.xlu0 %769
    %771 = vrot.lane.b32.xlu0 %v754, 16
    %v772 = vpop.permute.xlu0 %771
    %773 = vrot.lane.b32.xlu0 %v758, 16
    %v774 = vpop.permute.xlu0 %773
    %775 = vrot.lane.b32.xlu0 %v762, 16
    %v776 = vpop.permute.xlu0 %775
    %777 = vrot.lane.b32.xlu0 %v766, 16
    %v778 = vpop.permute.xlu0 %777
    %vm779 = vcmask 130048
    %v780 = vsel %vm779, %v768, %v770
    %v781 = vsel %vm779, %v770, %v772
    %v782 = vsel %vm779, %v774, %v776
    %v783 = vsel %vm779, %v776, %v778
    %v788 = vadd.f32 %v651, %v780
    %v789 = vadd.f32 %v652, %v781
    %v790 = vadd.f32 %v653, %v782
    %v791 = vadd.f32 %v654, %v783
    %s792 = sld [smem:[#allocation4 + $0x2]]
    %v793 = vstv %s792
    %v794 = vmul.f32 %v793, %v506
    %v795 = vmul.f32 %v793, %v507
    %v796 = vmul.f32 %v793, %v508
    %v797 = vmul.f32 %v793, %v509
    %s798 = sld [smem:[#allocation4 + $0xb]]
    %v799 = vstv %s798
    %v800 = vmul.f32 %v799, %v506
    %v801 = vmul.f32 %v799, %v507
    %v802 = vmul.f32 %v799, %v508
    %v803 = vmul.f32 %v799, %v509
    %v808 = vrot.slane %v800, 5
    %v809 = vrot.slane %v808, 4
    %v810 = vrot.slane %v801, 5
    %v811 = vrot.slane %v810, 4
    %v812 = vrot.slane %v802, 5
    %v813 = vrot.slane %v812, 4
    %v814 = vrot.slane %v803, 5
    %v815 = vrot.slane %v814, 4
    %v820 = vadd.f32 %v794, %v809
    %v821 = vadd.f32 %v795, %v811
    %v822 = vadd.f32 %v796, %v813
    %v823 = vadd.f32 %v797, %v815
    %s824 = sld [smem:[#allocation4 + $0x14]]
    %v825 = vstv %s824
    %v826 = vmul.f32 %v825, %v506
    %v827 = vmul.f32 %v825, %v507
    %v828 = vmul.f32 %v825, %v508
    %v829 = vmul.f32 %v825, %v509
    %v834 = vrot.slane %v826, 6
    %v835 = vrot.slane %v834, 4
    %v836 = vrot.slane %v827, 6
    %v837 = vrot.slane %v836, 4
    %v838 = vrot.slane %v828, 6
    %v839 = vrot.slane %v838, 4
    %v840 = vrot.slane %v829, 6
    %v841 = vrot.slane %v840, 4
    %v846 = vadd.f32 %v820, %v835
    %v847 = vadd.f32 %v821, %v837
    %v848 = vadd.f32 %v822, %v839
    %v849 = vadd.f32 %v823, %v841
    %s850 = sld [smem:[#allocation4 + $0x1d]]
    %v851 = vstv %s850
    %v852 = vmul.f32 %v851, %v506
    %v853 = vmul.f32 %v851, %v507
    %v854 = vmul.f32 %v851, %v508
    %v855 = vmul.f32 %v851, %v509
    %v860 = vrot.slane %v852, 7
    %v861 = vrot.slane %v860, 4
    %v862 = vrot.slane %v853, 7
    %v863 = vrot.slane %v862, 4
    %v864 = vrot.slane %v854, 7
    %v865 = vrot.slane %v864, 4
    %v866 = vrot.slane %v855, 7
    %v867 = vrot.slane %v866, 4
    %v872 = vadd.f32 %v846, %v861
    %v873 = vadd.f32 %v847, %v863
    %v874 = vadd.f32 %v848, %v865
    %v875 = vadd.f32 %v849, %v867
    %v876 = vsel %vm504, 1, 0
    %v877 = vsel %vm505, 1, 0
    %vm878 = vcmp.eq.s32.totalorder %v876, 1
    %vm879 = vcmp.eq.s32.totalorder %v877, 1
    %v884 = vlaneseq
    %v885 = vshrl.u32 %v884, 7
    %v886 = vsub.s32 0, %v885
    %v887 = vrot.slane %v872, %v886
    %v888 = vlaneseq
    %v889 = vshrl.u32 %v888, 7
    %v890 = vsub.s32 4, %v889
    %v891 = vrot.slane %v872, %v890
    %v892 = vlaneseq
    %v893 = vshrl.u32 %v892, 7
    %v894 = vsub.s32 0, %v893
    %v895 = vrot.slane %v873, %v894
    %v896 = vlaneseq
    %v897 = vshrl.u32 %v896, 7
    %v898 = vsub.s32 0, %v897
    %v899 = vrot.slane %v874, %v898
    %v900 = vlaneseq
    %v901 = vshrl.u32 %v900, 7
    %v902 = vsub.s32 4, %v901
    %v903 = vrot.slane %v874, %v902
    %v904 = vlaneseq
    %v905 = vshrl.u32 %v904, 7
    %v906 = vsub.s32 0, %v905
    %v907 = vrot.slane %v875, %v906
    %908 = vrot.lane.b32.xlu0 %v887, 15
    %v909 = vpop.permute.xlu0 %908
    %910 = vrot.lane.b32.xlu0 %v891, 15
    %v911 = vpop.permute.xlu0 %910
    %912 = vrot.lane.b32.xlu0 %v895, 15
    %v913 = vpop.permute.xlu0 %912
    %914 = vrot.lane.b32.xlu0 %v899, 15
    %v915 = vpop.permute.xlu0 %914
    %916 = vrot.lane.b32.xlu0 %v903, 15
    %v917 = vpop.permute.xlu0 %916
    %918 = vrot.lane.b32.xlu0 %v907, 15
    %v919 = vpop.permute.xlu0 %918
    %vm920 = vcmask 121856
    %v921 = vsel %vm920, %v909, %v911
    %v922 = vsel %vm920, %v911, %v913
    %v923 = vsel %vm920, %v915, %v917
    %v924 = vsel %vm920, %v917, %v919
    %v929 = vsel %vm878, %v921, 0.0
    %v930 = vsel %vm879, %v922, 0.0
    %v931 = vsel %vm878, %v923, 0.0
    %v932 = vsel %vm879, %v924, 0.0
    %v933 = vadd.f32 %v788, %v929
    %v934 = vadd.f32 %v789, %v930
    %v935 = vadd.f32 %v790, %v931
    %v936 = vadd.f32 %v791, %v932
    %s937 = sld [smem:[#allocation4 + $0x3]]
    %v938 = vstv %s937
    %v939 = vmul.f32 %v938, %v506
    %v940 = vmul.f32 %v938, %v507
    %v941 = vmul.f32 %v938, %v508
    %v942 = vmul.f32 %v938, %v509
    %s943 = sld [smem:[#allocation4 + $0xc]]
    %v944 = vstv %s943
    %v945 = vmul.f32 %v944, %v506
    %v946 = vmul.f32 %v944, %v507
    %v947 = vmul.f32 %v944, %v508
    %v948 = vmul.f32 %v944, %v509
    %v953 = vrot.slane %v945, 5
    %v954 = vrot.slane %v953, 4
    %v955 = vrot.slane %v946, 5
    %v956 = vrot.slane %v955, 4
    %v957 = vrot.slane %v947, 5
    %v958 = vrot.slane %v957, 4
    %v959 = vrot.slane %v948, 5
    %v960 = vrot.slane %v959, 4
    %v965 = vadd.f32 %v939, %v954
    %v966 = vadd.f32 %v940, %v956
    %v967 = vadd.f32 %v941, %v958
    %v968 = vadd.f32 %v942, %v960
    %s969 = sld [smem:[#allocation4 + $0x15]]
    %v970 = vstv %s969
    %v971 = vmul.f32 %v970, %v506
    %v972 = vmul.f32 %v970, %v507
    %v973 = vmul.f32 %v970, %v508
    %v974 = vmul.f32 %v970, %v509
    %v979 = vrot.slane %v971, 6
    %v980 = vrot.slane %v979, 4
    %v981 = vrot.slane %v972, 6
    %v982 = vrot.slane %v981, 4
    %v983 = vrot.slane %v973, 6
    %v984 = vrot.slane %v983, 4
    %v985 = vrot.slane %v974, 6
    %v986 = vrot.slane %v985, 4
    %v991 = vadd.f32 %v965, %v980
    %v992 = vadd.f32 %v966, %v982
    %v993 = vadd.f32 %v967, %v984
    %v994 = vadd.f32 %v968, %v986
    %s995 = sld [smem:[#allocation4 + $0x1e]]
    %v996 = vstv %s995
    %v997 = vmul.f32 %v996, %v506
    %v998 = vmul.f32 %v996, %v507
    %v999 = vmul.f32 %v996, %v508
    %v1000 = vmul.f32 %v996, %v509
    %v1005 = vrot.slane %v997, 7
    %v1006 = vrot.slane %v1005, 4
    %v1007 = vrot.slane %v998, 7
    %v1008 = vrot.slane %v1007, 4
    %v1009 = vrot.slane %v999, 7
    %v1010 = vrot.slane %v1009, 4
    %v1011 = vrot.slane %v1000, 7
    %v1012 = vrot.slane %v1011, 4
    %v1017 = vadd.f32 %v991, %v1006
    %v1018 = vadd.f32 %v992, %v1008
    %v1019 = vadd.f32 %v993, %v1010
    %v1020 = vadd.f32 %v994, %v1012
    %v1025 = vlaneseq
    %v1026 = vshrl.u32 %v1025, 7
    %v1027 = vsub.s32 0, %v1026
    %v1028 = vrot.slane %v1017, %v1027
    %v1029 = vlaneseq
    %v1030 = vshrl.u32 %v1029, 7
    %v1031 = vsub.s32 4, %v1030
    %v1032 = vrot.slane %v1017, %v1031
    %v1033 = vlaneseq
    %v1034 = vshrl.u32 %v1033, 7
    %v1035 = vsub.s32 0, %v1034
    %v1036 = vrot.slane %v1018, %v1035
    %v1037 = vlaneseq
    %v1038 = vshrl.u32 %v1037, 7
    %v1039 = vsub.s32 0, %v1038
    %v1040 = vrot.slane %v1019, %v1039
    %v1041 = vlaneseq
    %v1042 = vshrl.u32 %v1041, 7
    %v1043 = vsub.s32 4, %v1042
    %v1044 = vrot.slane %v1019, %v1043
    %v1045 = vlaneseq
    %v1046 = vshrl.u32 %v1045, 7
    %v1047 = vsub.s32 0, %v1046
    %v1048 = vrot.slane %v1020, %v1047
    %1049 = vrot.lane.b32.xlu0 %v1028, 1
    %v1050 = vpop.permute.xlu0 %1049
    %1051 = vrot.lane.b32.xlu0 %v1032, 1
    %v1052 = vpop.permute.xlu0 %1051
    %1053 = vrot.lane.b32.xlu0 %v1036, 1
    %v1054 = vpop.permute.xlu0 %1053
    %1055 = vrot.lane.b32.xlu0 %v1040, 1
    %v1056 = vpop.permute.xlu0 %1055
    %1057 = vrot.lane.b32.xlu0 %v1044, 1
    %v1058 = vpop.permute.xlu0 %1057
    %1059 = vrot.lane.b32.xlu0 %v1048, 1
    %v1060 = vpop.permute.xlu0 %1059
    %vm1061 = vcmask 7168
    %v1062 = vsel %vm1061, %v1050, %v1052
    %v1063 = vsel %vm1061, %v1052, %v1054
    %v1064 = vsel %vm1061, %v1056, %v1058
    %v1065 = vsel %vm1061, %v1058, %v1060
    %v1070 = vsel %vm596, %v1062, 0.0
    %v1071 = vsel %vm597, %v1063, 0.0
    %v1072 = vsel %vm596, %v1064, 0.0
    %v1073 = vsel %vm597, %v1065, 0.0
    %v1074 = vadd.f32 %v933, %v1070
    %v1075 = vadd.f32 %v934, %v1071
    %v1076 = vadd.f32 %v935, %v1072
    %v1077 = vadd.f32 %v936, %v1073
    %v1078 = vld [vmem:[#allocation2 + $0x4] sm:$0xff]
    %v1079 = vld [vmem:[#allocation2 + $0x14] sm:$0xff]
    %s1080 = sld [smem:[#allocation4 + $0x4]]
    %v1081 = vstv %s1080
    %v1082 = vmul.f32 %v1081, %v1078
    %v1083 = vmul.f32 %v1081, %v1079
    %s1084 = sld [smem:[#allocation4 + $0xd]]
    %v1085 = vstv %s1084
    %v1086 = vmul.f32 %v1085, %v1078
    %v1087 = vmul.f32 %v1085, %v1079
    %v1090 = vrot.slane %v1086, 5
    %v1091 = vrot.slane %v1090, 4
    %v1092 = vrot.slane %v1087, 5
    %v1093 = vrot.slane %v1092, 4
    %v1096 = vadd.f32 %v1082, %v1091
    %v1097 = vadd.f32 %v1083, %v1093
    %s1098 = sld [smem:[#allocation4 + $0x16]]
    %v1099 = vstv %s1098
    %v1100 = vmul.f32 %v1099, %v1078
    %v1101 = vmul.f32 %v1099, %v1079
    %v1104 = vrot.slane %v1100, 6
    %v1105 = vrot.slane %v1104, 4
    %v1106 = vrot.slane %v1101, 6
    %v1107 = vrot.slane %v1106, 4
    %v1110 = vadd.f32 %v1096, %v1105
    %v1111 = vadd.f32 %v1097, %v1107
    %s1112 = sld [smem:[#allocation4 + $0x1f]]
    %v1113 = vstv %s1112
    %v1114 = vmul.f32 %v1113, %v1078
    %v1115 = vmul.f32 %v1113, %v1079
    %v1118 = vrot.slane %v1114, 7
    %v1119 = vrot.slane %v1118, 4
    %v1120 = vrot.slane %v1115, 7
    %v1121 = vrot.slane %v1120, 4
    %v1124 = vadd.f32 %v1110, %v1119
    %v1125 = vadd.f32 %v1111, %v1121
    %v1128 = vlaneseq
    %v1129 = vshrl.u32 %v1128, 7
    %v1130 = vsub.s32 0, %v1129
    %v1131 = vrot.slane %v1124, %v1130
    %v1132 = vlaneseq
    %v1133 = vshrl.u32 %v1132, 7
    %v1134 = vsub.s32 4, %v1133
    %v1135 = vrot.slane %v1124, %v1134
    %v1136 = vlaneseq
    %v1137 = vshrl.u32 %v1136, 7
    %v1138 = vsub.s32 0, %v1137
    %v1139 = vrot.slane %v1125, %v1138
    %v1140 = vlaneseq
    %v1141 = vshrl.u32 %v1140, 7
    %v1142 = vsub.s32 4, %v1141
    %v1143 = vrot.slane %v1125, %v1142
    %v1148 = vadd.f32 %v1074, %v1131
    %v1149 = vadd.f32 %v1075, %v1135
    %v1150 = vadd.f32 %v1076, %v1139
    %v1151 = vadd.f32 %v1077, %v1143
    %v1152 = vld [vmem:[#allocation2 + $0x4] sm:$0xff]
    %v1153 = vld [vmem:[#allocation2 + $0xc] sm:$0xf]
    %v1154 = vld [vmem:[#allocation2 + $0x14] sm:$0xff]
    %v1155 = vld [vmem:[#allocation2 + $0x1c] sm:$0xf]
    %s1156 = sld [smem:[#allocation4 + $0x5]]
    %v1157 = vstv %s1156
    %v1158 = vmul.f32 %v1157, %v1152
    %v1159 = vmul.f32 %v1157, %v1153
    %v1160 = vmul.f32 %v1157, %v1154
    %v1161 = vmul.f32 %v1157, %v1155
    %s1162 = sld [smem:[#allocation4 + $0xe]]
    %v1163 = vstv %s1162
    %v1164 = vmul.f32 %v1163, %v1152
    %v1165 = vmul.f32 %v1163, %v1153
    %v1166 = vmul.f32 %v1163, %v1154
    %v1167 = vmul.f32 %v1163, %v1155
    %v1172 = vrot.slane %v1164, 5
    %v1173 = vrot.slane %v1172, 4
    %v1174 = vrot.slane %v1165, 5
    %v1175 = vrot.slane %v1174, 4
    %v1176 = vrot.slane %v1166, 5
    %v1177 = vrot.slane %v1176, 4
    %v1178 = vrot.slane %v1167, 5
    %v1179 = vrot.slane %v1178, 4
    %v1184 = vadd.f32 %v1158, %v1173
    %v1185 = vadd.f32 %v1159, %v1175
    %v1186 = vadd.f32 %v1160, %v1177
    %v1187 = vadd.f32 %v1161, %v1179
    %s1188 = sld [smem:[#allocation4 + $0x17]]
    %v1189 = vstv %s1188
    %v1190 = vmul.f32 %v1189, %v1152
    %v1191 = vmul.f32 %v1189, %v1153
    %v1192 = vmul.f32 %v1189, %v1154
    %v1193 = vmul.f32 %v1189, %v1155
    %v1198 = vrot.slane %v1190, 6
    %v1199 = vrot.slane %v1198, 4
    %v1200 = vrot.slane %v1191, 6
    %v1201 = vrot.slane %v1200, 4
    %v1202 = vrot.slane %v1192, 6
    %v1203 = vrot.slane %v1202, 4
    %v1204 = vrot.slane %v1193, 6
    %v1205 = vrot.slane %v1204, 4
    %v1210 = vadd.f32 %v1184, %v1199
    %v1211 = vadd.f32 %v1185, %v1201
    %v1212 = vadd.f32 %v1186, %v1203
    %v1213 = vadd.f32 %v1187, %v1205
    %s1214 = sld [smem:[#allocation4 + $0x20]]
    %v1215 = vstv %s1214
    %v1216 = vmul.f32 %v1215, %v1152
    %v1217 = vmul.f32 %v1215, %v1153
    %v1218 = vmul.f32 %v1215, %v1154
    %v1219 = vmul.f32 %v1215, %v1155
    %v1224 = vrot.slane %v1216, 7
    %v1225 = vrot.slane %v1224, 4
    %v1226 = vrot.slane %v1217, 7
    %v1227 = vrot.slane %v1226, 4
    %v1228 = vrot.slane %v1218, 7
    %v1229 = vrot.slane %v1228, 4
    %v1230 = vrot.slane %v1219, 7
    %v1231 = vrot.slane %v1230, 4
    %v1236 = vadd.f32 %v1210, %v1225
    %v1237 = vadd.f32 %v1211, %v1227
    %v1238 = vadd.f32 %v1212, %v1229
    %v1239 = vadd.f32 %v1213, %v1231
    %v1244 = vlaneseq
    %v1245 = vshrl.u32 %v1244, 7
    %v1246 = vsub.s32 0, %v1245
    %v1247 = vrot.slane %v1236, %v1246
    %v1248 = vlaneseq
    %v1249 = vshrl.u32 %v1248, 7
    %v1250 = vsub.s32 4, %v1249
    %v1251 = vrot.slane %v1236, %v1250
    %v1252 = vlaneseq
    %v1253 = vshrl.u32 %v1252, 7
    %v1254 = vsub.s32 0, %v1253
    %v1255 = vrot.slane %v1237, %v1254
    %v1256 = vlaneseq
    %v1257 = vshrl.u32 %v1256, 7
    %v1258 = vsub.s32 0, %v1257
    %v1259 = vrot.slane %v1238, %v1258
    %v1260 = vlaneseq
    %v1261 = vshrl.u32 %v1260, 7
    %v1262 = vsub.s32 4, %v1261
    %v1263 = vrot.slane %v1238, %v1262
    %v1264 = vlaneseq
    %v1265 = vshrl.u32 %v1264, 7
    %v1266 = vsub.s32 0, %v1265
    %v1267 = vrot.slane %v1239, %v1266
    %1268 = vrot.lane.b32.xlu0 %v1247, 127
    %v1269 = vpop.permute.xlu0 %1268
    %1270 = vrot.lane.b32.xlu0 %v1251, 127
    %v1271 = vpop.permute.xlu0 %1270
    %1272 = vrot.lane.b32.xlu0 %v1255, 127
    %v1273 = vpop.permute.xlu0 %1272
    %1274 = vrot.lane.b32.xlu0 %v1259, 127
    %v1275 = vpop.permute.xlu0 %1274
    %1276 = vrot.lane.b32.xlu0 %v1263, 127
    %v1277 = vpop.permute.xlu0 %1276
    %1278 = vrot.lane.b32.xlu0 %v1267, 127
    %v1279 = vpop.permute.xlu0 %1278
    %vm1280 = vcmask 1039360
    %v1281 = vsel %vm1280, %v1269, %v1271
    %v1282 = vsel %vm1280, %v1271, %v1273
    %v1283 = vsel %vm1280, %v1275, %v1277
    %v1284 = vsel %vm1280, %v1277, %v1279
    %v1289 = vsel %vm878, %v1281, 0.0
    %v1290 = vsel %vm879, %v1282, 0.0
    %v1291 = vsel %vm878, %v1283, 0.0
    %v1292 = vsel %vm879, %v1284, 0.0
    %v1293 = vadd.f32 %v1148, %v1289
    %v1294 = vadd.f32 %v1149, %v1290
    %v1295 = vadd.f32 %v1150, %v1291
    %v1296 = vadd.f32 %v1151, %v1292
    %s1297 = sld [smem:[#allocation4 + $0x6]]
    %v1298 = vstv %s1297
    %v1299 = vmul.f32 %v1298, %v1152
    %v1300 = vmul.f32 %v1298, %v1153
    %v1301 = vmul.f32 %v1298, %v1154
    %v1302 = vmul.f32 %v1298, %v1155
    %s1303 = sld [smem:[#allocation4 + $0xf]]
    %v1304 = vstv %s1303
    %v1305 = vmul.f32 %v1304, %v1152
    %v1306 = vmul.f32 %v1304, %v1153
    %v1307 = vmul.f32 %v1304, %v1154
    %v1308 = vmul.f32 %v1304, %v1155
    %v1313 = vrot.slane %v1305, 5
    %v1314 = vrot.slane %v1313, 4
    %v1315 = vrot.slane %v1306, 5
    %v1316 = vrot.slane %v1315, 4
    %v1317 = vrot.slane %v1307, 5
    %v1318 = vrot.slane %v1317, 4
    %v1319 = vrot.slane %v1308, 5
    %v1320 = vrot.slane %v1319, 4
    %v1325 = vadd.f32 %v1299, %v1314
    %v1326 = vadd.f32 %v1300, %v1316
    %v1327 = vadd.f32 %v1301, %v1318
    %v1328 = vadd.f32 %v1302, %v1320
    %s1329 = sld [smem:[#allocation4 + $0x18]]
    %v1330 = vstv %s1329
    %v1331 = vmul.f32 %v1330, %v1152
    %v1332 = vmul.f32 %v1330, %v1153
    %v1333 = vmul.f32 %v1330, %v1154
    %v1334 = vmul.f32 %v1330, %v1155
    %v1339 = vrot.slane %v1331, 6
    %v1340 = vrot.slane %v1339, 4
    %v1341 = vrot.slane %v1332, 6
    %v1342 = vrot.slane %v1341, 4
    %v1343 = vrot.slane %v1333, 6
    %v1344 = vrot.slane %v1343, 4
    %v1345 = vrot.slane %v1334, 6
    %v1346 = vrot.slane %v1345, 4
    %v1351 = vadd.f32 %v1325, %v1340
    %v1352 = vadd.f32 %v1326, %v1342
    %v1353 = vadd.f32 %v1327, %v1344
    %v1354 = vadd.f32 %v1328, %v1346
    %s1355 = sld [smem:[#allocation4 + $0x21]]
    %v1356 = vstv %s1355
    %v1357 = vmul.f32 %v1356, %v1152
    %v1358 = vmul.f32 %v1356, %v1153
    %v1359 = vmul.f32 %v1356, %v1154
    %v1360 = vmul.f32 %v1356, %v1155
    %v1365 = vrot.slane %v1357, 7
    %v1366 = vrot.slane %v1365, 4
    %v1367 = vrot.slane %v1358, 7
    %v1368 = vrot.slane %v1367, 4
    %v1369 = vrot.slane %v1359, 7
    %v1370 = vrot.slane %v1369, 4
    %v1371 = vrot.slane %v1360, 7
    %v1372 = vrot.slane %v1371, 4
    %v1377 = vadd.f32 %v1351, %v1366
    %v1378 = vadd.f32 %v1352, %v1368
    %v1379 = vadd.f32 %v1353, %v1370
    %v1380 = vadd.f32 %v1354, %v1372
    %v1385 = vlaneseq
    %v1386 = vshrl.u32 %v1385, 7
    %v1387 = vsub.s32 0, %v1386
    %v1388 = vrot.slane %v1377, %v1387
    %v1389 = vlaneseq
    %v1390 = vshrl.u32 %v1389, 7
    %v1391 = vsub.s32 4, %v1390
    %v1392 = vrot.slane %v1377, %v1391
    %v1393 = vlaneseq
    %v1394 = vshrl.u32 %v1393, 7
    %v1395 = vsub.s32 0, %v1394
    %v1396 = vrot.slane %v1378, %v1395
    %v1397 = vlaneseq
    %v1398 = vshrl.u32 %v1397, 7
    %v1399 = vsub.s32 0, %v1398
    %v1400 = vrot.slane %v1379, %v1399
    %v1401 = vlaneseq
    %v1402 = vshrl.u32 %v1401, 7
    %v1403 = vsub.s32 4, %v1402
    %v1404 = vrot.slane %v1379, %v1403
    %v1405 = vlaneseq
    %v1406 = vshrl.u32 %v1405, 7
    %v1407 = vsub.s32 0, %v1406
    %v1408 = vrot.slane %v1380, %v1407
    %1409 = vrot.lane.b32.xlu0 %v1388, 113
    %v1410 = vpop.permute.xlu0 %1409
    %1411 = vrot.lane.b32.xlu0 %v1392, 113
    %v1412 = vpop.permute.xlu0 %1411
    %1413 = vrot.lane.b32.xlu0 %v1396, 113
    %v1414 = vpop.permute.xlu0 %1413
    %1415 = vrot.lane.b32.xlu0 %v1400, 113
    %v1416 = vpop.permute.xlu0 %1415
    %1417 = vrot.lane.b32.xlu0 %v1404, 113
    %v1418 = vpop.permute.xlu0 %1417
    %1419 = vrot.lane.b32.xlu0 %v1408, 113
    %v1420 = vpop.permute.xlu0 %1419
    %vm1421 = vcmask 924672
    %v1422 = vsel %vm1421, %v1410, %v1412
    %v1423 = vsel %vm1421, %v1412, %v1414
    %v1424 = vsel %vm1421, %v1416, %v1418
    %v1425 = vsel %vm1421, %v1418, %v1420
    %v1430 = vsel %vm596, %v1422, 0.0
    %v1431 = vsel %vm597, %v1423, 0.0
    %v1432 = vsel %vm596, %v1424, 0.0
    %v1433 = vsel %vm597, %v1425, 0.0
    %v1434 = vadd.f32 %v1293, %v1430
    %v1435 = vadd.f32 %v1294, %v1431
    %v1436 = vadd.f32 %v1295, %v1432
    %v1437 = vadd.f32 %v1296, %v1433
    %s1438 = sld [smem:[#allocation4 + $0x7]]
    %v1439 = vstv %s1438
    %v1440 = vmul.f32 %v1439, %v1152
    %v1441 = vmul.f32 %v1439, %v1153
    %v1442 = vmul.f32 %v1439, %v1154
    %v1443 = vmul.f32 %v1439, %v1155
    %s1444 = sld [smem:[#allocation4 + $0x10]]
    %v1445 = vstv %s1444
    %v1446 = vmul.f32 %v1445, %v1152
    %v1447 = vmul.f32 %v1445, %v1153
    %v1448 = vmul.f32 %v1445, %v1154
    %v1449 = vmul.f32 %v1445, %v1155
    %v1454 = vrot.slane %v1446, 5
    %v1455 = vrot.slane %v1454, 4
    %v1456 = vrot.slane %v1447, 5
    %v1457 = vrot.slane %v1456, 4
    %v1458 = vrot.slane %v1448, 5
    %v1459 = vrot.slane %v1458, 4
    %v1460 = vrot.slane %v1449, 5
    %v1461 = vrot.slane %v1460, 4
    %v1466 = vadd.f32 %v1440, %v1455
    %v1467 = vadd.f32 %v1441, %v1457
    %v1468 = vadd.f32 %v1442, %v1459
    %v1469 = vadd.f32 %v1443, %v1461
    %s1470 = sld [smem:[#allocation4 + $0x19]]
    %v1471 = vstv %s1470
    %v1472 = vmul.f32 %v1471, %v1152
    %v1473 = vmul.f32 %v1471, %v1153
    %v1474 = vmul.f32 %v1471, %v1154
    %v1475 = vmul.f32 %v1471, %v1155
    %v1480 = vrot.slane %v1472, 6
    %v1481 = vrot.slane %v1480, 4
    %v1482 = vrot.slane %v1473, 6
    %v1483 = vrot.slane %v1482, 4
    %v1484 = vrot.slane %v1474, 6
    %v1485 = vrot.slane %v1484, 4
    %v1486 = vrot.slane %v1475, 6
    %v1487 = vrot.slane %v1486, 4
    %v1492 = vadd.f32 %v1466, %v1481
    %v1493 = vadd.f32 %v1467, %v1483
    %v1494 = vadd.f32 %v1468, %v1485
    %v1495 = vadd.f32 %v1469, %v1487
    %s1496 = sld [smem:[#allocation4 + $0x22]]
    %v1497 = vstv %s1496
    %v1498 = vmul.f32 %v1497, %v1152
    %v1499 = vmul.f32 %v1497, %v1153
    %v1500 = vmul.f32 %v1497, %v1154
    %v1501 = vmul.f32 %v1497, %v1155
    %v1506 = vrot.slane %v1498, 7
    %v1507 = vrot.slane %v1506, 4
    %v1508 = vrot.slane %v1499, 7
    %v1509 = vrot.slane %v1508, 4
    %v1510 = vrot.slane %v1500, 7
    %v1511 = vrot.slane %v1510, 4
    %v1512 = vrot.slane %v1501, 7
    %v1513 = vrot.slane %v1512, 4
    %v1518 = vadd.f32 %v1492, %v1507
    %v1519 = vadd.f32 %v1493, %v1509
    %v1520 = vadd.f32 %v1494, %v1511
    %v1521 = vadd.f32 %v1495, %v1513
    %v1526 = vlaneseq
    %v1527 = vshrl.u32 %v1526, 7
    %v1528 = vsub.s32 0, %v1527
    %v1529 = vrot.slane %v1518, %v1528
    %v1530 = vlaneseq
    %v1531 = vshrl.u32 %v1530, 7
    %v1532 = vsub.s32 4, %v1531
    %v1533 = vrot.slane %v1518, %v1532
    %v1534 = vlaneseq
    %v1535 = vshrl.u32 %v1534, 7
    %v1536 = vsub.s32 0, %v1535
    %v1537 = vrot.slane %v1519, %v1536
    %v1538 = vlaneseq
    %v1539 = vshrl.u32 %v1538, 7
    %v1540 = vsub.s32 0, %v1539
    %v1541 = vrot.slane %v1520, %v1540
    %v1542 = vlaneseq
    %v1543 = vshrl.u32 %v1542, 7
    %v1544 = vsub.s32 4, %v1543
    %v1545 = vrot.slane %v1520, %v1544
    %v1546 = vlaneseq
    %v1547 = vshrl.u32 %v1546, 7
    %v1548 = vsub.s32 0, %v1547
    %v1549 = vrot.slane %v1521, %v1548
    %1550 = vrot.lane.b32.xlu0 %v1529, 112
    %v1551 = vpop.permute.xlu0 %1550
    %1552 = vrot.lane.b32.xlu0 %v1533, 112
    %v1553 = vpop.permute.xlu0 %1552
    %1554 = vrot.lane.b32.xlu0 %v1537, 112
    %v1555 = vpop.permute.xlu0 %1554
    %1556 = vrot.lane.b32.xlu0 %v1541, 112
    %v1557 = vpop.permute.xlu0 %1556
    %1558 = vrot.lane.b32.xlu0 %v1545, 112
    %v1559 = vpop.permute.xlu0 %1558
    %1560 = vrot.lane.b32.xlu0 %v1549, 112
    %v1561 = vpop.permute.xlu0 %1560
    %vm1562 = vcmask 916480
    %v1563 = vsel %vm1562, %v1551, %v1553
    %v1564 = vsel %vm1562, %v1553, %v1555
    %v1565 = vsel %vm1562, %v1557, %v1559
    %v1566 = vsel %vm1562, %v1559, %v1561
    %v1571 = vadd.f32 %v1434, %v1563
    %v1572 = vadd.f32 %v1435, %v1564
    %v1573 = vadd.f32 %v1436, %v1565
    %v1574 = vadd.f32 %v1437, %v1566
    %s1575 = sld [smem:[#allocation4 + $0x8]]
    %v1576 = vstv %s1575
    %v1577 = vmul.f32 %v1576, %v1152
    %v1578 = vmul.f32 %v1576, %v1153
    %v1579 = vmul.f32 %v1576, %v1154
    %v1580 = vmul.f32 %v1576, %v1155
    %s1581 = sld [smem:[#allocation4 + $0x11]]
    %v1582 = vstv %s1581
    %v1583 = vmul.f32 %v1582, %v1152
    %v1584 = vmul.f32 %v1582, %v1153
    %v1585 = vmul.f32 %v1582, %v1154
    %v1586 = vmul.f32 %v1582, %v1155
    %v1591 = vrot.slane %v1583, 5
    %v1592 = vrot.slane %v1591, 4
    %v1593 = vrot.slane %v1584, 5
    %v1594 = vrot.slane %v1593, 4
    %v1595 = vrot.slane %v1585, 5
    %v1596 = vrot.slane %v1595, 4
    %v1597 = vrot.slane %v1586, 5
    %v1598 = vrot.slane %v1597, 4
    %v1603 = vadd.f32 %v1577, %v1592
    %v1604 = vadd.f32 %v1578, %v1594
    %v1605 = vadd.f32 %v1579, %v1596
    %v1606 = vadd.f32 %v1580, %v1598
    %s1607 = sld [smem:[#allocation4 + $0x1a]]
    %v1608 = vstv %s1607
    %v1609 = vmul.f32 %v1608, %v1152
    %v1610 = vmul.f32 %v1608, %v1153
    %v1611 = vmul.f32 %v1608, %v1154
    %v1612 = vmul.f32 %v1608, %v1155
    %v1617 = vrot.slane %v1609, 6
    %v1618 = vrot.slane %v1617, 4
    %v1619 = vrot.slane %v1610, 6
    %v1620 = vrot.slane %v1619, 4
    %v1621 = vrot.slane %v1611, 6
    %v1622 = vrot.slane %v1621, 4
    %v1623 = vrot.slane %v1612, 6
    %v1624 = vrot.slane %v1623, 4
    %v1629 = vadd.f32 %v1603, %v1618
    %v1630 = vadd.f32 %v1604, %v1620
    %v1631 = vadd.f32 %v1605, %v1622
    %v1632 = vadd.f32 %v1606, %v1624
    %s1633 = sld [smem:[#allocation4 + $0x23]]
    %v1634 = vstv %s1633
    %v1635 = vmul.f32 %v1634, %v1152
    %v1636 = vmul.f32 %v1634, %v1153
    %v1637 = vmul.f32 %v1634, %v1154
    %v1638 = vmul.f32 %v1634, %v1155
    %v1643 = vrot.slane %v1635, 7
    %v1644 = vrot.slane %v1643, 4
    %v1645 = vrot.slane %v1636, 7
    %v1646 = vrot.slane %v1645, 4
    %v1647 = vrot.slane %v1637, 7
    %v1648 = vrot.slane %v1647, 4
    %v1649 = vrot.slane %v1638, 7
    %v1650 = vrot.slane %v1649, 4
    %v1655 = vadd.f32 %v1629, %v1644
    %v1656 = vadd.f32 %v1630, %v1646
    %v1657 = vadd.f32 %v1631, %v1648
    %v1658 = vadd.f32 %v1632, %v1650
    %v1663 = vlaneseq
    %v1664 = vshrl.u32 %v1663, 7
    %v1665 = vsub.s32 0, %v1664
    %v1666 = vrot.slane %v1655, %v1665
    %v1667 = vlaneseq
    %v1668 = vshrl.u32 %v1667, 7
    %v1669 = vsub.s32 4, %v1668
    %v1670 = vrot.slane %v1655, %v1669
    %v1671 = vlaneseq
    %v1672 = vshrl.u32 %v1671, 7
    %v1673 = vsub.s32 0, %v1672
    %v1674 = vrot.slane %v1656, %v1673
    %v1675 = vlaneseq
    %v1676 = vshrl.u32 %v1675, 7
    %v1677 = vsub.s32 0, %v1676
    %v1678 = vrot.slane %v1657, %v1677
    %v1679 = vlaneseq
    %v1680 = vshrl.u32 %v1679, 7
    %v1681 = vsub.s32 4, %v1680
    %v1682 = vrot.slane %v1657, %v1681
    %v1683 = vlaneseq
    %v1684 = vshrl.u32 %v1683, 7
    %v1685 = vsub.s32 0, %v1684
    %v1686 = vrot.slane %v1658, %v1685
    %1687 = vrot.lane.b32.xlu0 %v1666, 111
    %v1688 = vpop.permute.xlu0 %1687
    %1689 = vrot.lane.b32.xlu0 %v1670, 111
    %v1690 = vpop.permute.xlu0 %1689
    %1691 = vrot.lane.b32.xlu0 %v1674, 111
    %v1692 = vpop.permute.xlu0 %1691
    %1693 = vrot.lane.b32.xlu0 %v1678, 111
    %v1694 = vpop.permute.xlu0 %1693
    %1695 = vrot.lane.b32.xlu0 %v1682, 111
    %v1696 = vpop.permute.xlu0 %1695
    %1697 = vrot.lane.b32.xlu0 %v1686, 111
    %v1698 = vpop.permute.xlu0 %1697
    %vm1699 = vcmask 908288
    %v1700 = vsel %vm1699, %v1688, %v1690
    %v1701 = vsel %vm1699, %v1690, %v1692
    %v1702 = vsel %vm1699, %v1694, %v1696
    %v1703 = vsel %vm1699, %v1696, %v1698
    %v1708 = vsel %vm878, %v1700, 0.0
    %v1709 = vsel %vm879, %v1701, 0.0
    %v1710 = vsel %vm878, %v1702, 0.0
    %v1711 = vsel %vm879, %v1703, 0.0
    %v1712 = vadd.f32 %v1571, %v1708
    %v1713 = vadd.f32 %v1572, %v1709
    %v1714 = vadd.f32 %v1573, %v1710
    %v1715 = vadd.f32 %v1574, %v1711
    %s1716 = sld [smem:[#allocation3]]
    %v1717 = vstv %s1716
    %v1718 = vadd.f32 %v1712, %v1717
    %v1719 = vadd.f32 %v1713, %v1717
    %v1720 = vadd.f32 %v1714, %v1717
    %v1721 = vadd.f32 %v1715, %v1717
    %v1722 = vsub.f32 0.0, %v1718
    %v1723 = vsub.f32 0.0, %v1719
    %v1724 = vsub.f32 0.0, %v1720
    %v1725 = vsub.f32 0.0, %v1721
    %v1726 = vmul.f32 %v1722, 1.442695
    %v1727 = vpow.pop %v1726
    %v1728 = vmul.f32 %v1723, 1.442695
    %v1729 = vpow.pop %v1728
    %v1730 = vmul.f32 %v1724, 1.442695
    %v1731 = vpow.pop %v1730
    %v1732 = vmul.f32 %v1725, 1.442695
    %v1733 = vpow.pop %v1732
    %v1734 = vadd.f32 %v1727, 1.0
    %v1735 = vadd.f32 %v1729, 1.0
    %v1736 = vadd.f32 %v1731, 1.0
    %v1737 = vadd.f32 %v1733, 1.0
    %v1738 = vrcp.pop %v1734
    %v1739 = vmul.f32 1.0, %v1738
    %v1740 = vrcp.pop %v1735
    %v1741 = vmul.f32 1.0, %v1740
    %v1742 = vrcp.pop %v1736
    %v1743 = vmul.f32 1.0, %v1742
    %v1744 = vrcp.pop %v1737
    %v1745 = vmul.f32 1.0, %v1744
    %1747 = vset.pattern.permute.xlu0 0
    %1748 = vperm.xlu0 %1747, %v193
    %v1749 = vpop.permute.xlu0 %1748
    %1752 = vset.pattern.permute.xlu0 0
    %1753 = vperm.xlu0 %1752, %v195
    %v1754 = vpop.permute.xlu0 %1753
    %1757 = vset.pattern.permute.xlu0 0
    %1758 = vperm.xlu0 %1757, %v197
    %v1759 = vpop.permute.xlu0 %1758
    %1762 = vset.pattern.permute.xlu0 0
    %1763 = vperm.xlu0 %1762, %v199
    %v1764 = vpop.permute.xlu0 %1763
    %v1766 = vlaneseq
    %v1767 = vshrl.u32 %v1766, 7
    %v1768 = vsub.s32 0, %v1767
    %v1769 = vrot.slane %v1739, %v1768
    %v1770 = vlaneseq
    %v1771 = vshrl.u32 %v1770, 7
    %v1772 = vsub.s32 0, %v1771
    %v1773 = vrot.slane %v1741, %v1772
    %v1774 = vlaneseq
    %v1775 = vshrl.u32 %v1774, 7
    %v1776 = vsub.s32 0, %v1775
    %v1777 = vrot.slane %v1743, %v1776
    %v1778 = vlaneseq
    %v1779 = vshrl.u32 %v1778, 7
    %v1780 = vsub.s32 0, %v1779
    %v1781 = vrot.slane %v1745, %v1780
    %v1782 = vmul.f32 %v1749, %v1769
    %v1783 = vmul.f32 %v1749, %v1773
    %v1784 = vmul.f32 %v1754, %v1769
    %v1785 = vmul.f32 %v1754, %v1773
    %v1786 = vmul.f32 %v1759, %v1777
    %v1787 = vmul.f32 %v1759, %v1781
    %v1788 = vmul.f32 %v1764, %v1777
    %v1789 = vmul.f32 %v1764, %v1781
    %v1790 = vadd.f32 %v1782, 1.0
    %v1791 = vadd.f32 %v1783, 1.0
    %v1792 = vadd.f32 %v1784, 1.0
    %v1793 = vadd.f32 %v1785, 1.0
    %v1794 = vadd.f32 %v1786, 1.0
    %v1795 = vadd.f32 %v1787, 1.0
    %v1796 = vadd.f32 %v1788, 1.0
    %v1797 = vadd.f32 %v1789, 1.0
    %v1798 = vmul.f32 %v38, %v1790
    %v1799 = vmul.f32 %v39, %v1791
    %v1800 = vmul.f32 %v40, %v1792
    %v1801 = vmul.f32 %v41, %v1793
    %v1802 = vmul.f32 %v42, %v1794
    %v1803 = vmul.f32 %v43, %v1795
    %v1804 = vmul.f32 %v44, %v1796
    %v1805 = vmul.f32 %v45, %v1797
    %1806 = vst [vmem:[#allocation7] sm:$0xff] %v1798
    %1807 = vst [vmem:[#allocation7 + $0x8] sm:$0xff] %v1799
    %1808 = vst [vmem:[#allocation7 + $0x10] sm:$0xff] %v1800
    %1809 = vst [vmem:[#allocation7 + $0x18] sm:$0xff] %v1801
    %1810 = vst [vmem:[#allocation7 + $0x20] sm:$0xff] %v1802
    %1811 = vst [vmem:[#allocation7 + $0x28] sm:$0xff] %v1803
    %1812 = vst [vmem:[#allocation7 + $0x30] sm:$0xff] %v1804
    %1813 = vst [vmem:[#allocation7 + $0x38] sm:$0xff] %v1805
    // Predicated region
    $region30: #{tpu_custom_call.1} parent=1 // pred_check
      _
    $region31: #{tpu_custom_call.1} parent=1 // pred_check_branch
      %1815 = sbr.rel (0) target = $region33
    $region32: #{tpu_custom_call.1} parent=1 // pred_region
      %s1817 = ssub.s32 1024, 1024
      %1818 = vsyncadd [#allocation5], %s1817
      %s1819 = sshll.u32 [#allocation7], 4
      %s1820 = int_to_ptr.vmem [resolvable:$true] %s1819
      %1825 = dma.vmem_to_hbm [thread:$0]  %s1820, 1024, %s6, [#allocation5], 256, 256, 16
    $region33: #{tpu_custom_call.1} parent=1 // pred_fallthru
      _
    // Predicated region
    $region34: #{tpu_custom_call.1} parent=1 // pred_check
      _
    $region35: #{tpu_custom_call.1} parent=1 // pred_check_branch
      %1827 = sbr.rel (0) target = $region37
    $region36: #{tpu_custom_call.1} parent=1 // pred_region
      %1828 = dma.done [#allocation5], 1024
    $region37: #{tpu_custom_call.1} parent=1 // pred_fallthru
      _
    %1829 = vsyncpa [#allocation5], 1
    %1830 = vsyncpa [#allocation6], 1

</llo_original>
